<compile_context>
chip_gen: v7x
topology: tpu7x:2x2x1
jax: 0.10.0
libtpu: 0.0.40
codegen_flags: <defaults>
</compile_context>

<pallas_src>
import functools

import numpy as np
import jax
import jax.numpy as jnp
from jax import lax
from jax.experimental import pallas as pl
from jax.experimental.pallas import tpu as pltpu


def _round_up(x, m):
    return -(-x // m) * m


def _num_tensorcores():
    """Best-effort TensorCore count (v7x has 2 per chip); falls back to 1."""
    get_info = getattr(pltpu, "get_tpu_info", None)
    if get_info is None:
        return 1
    try:
        info = get_info()
    except Exception:
        return 1
    for name in ("num_tensorcores", "tensorcores_per_chip", "num_cores",
                 "core_count"):
        val = getattr(info, name, None)
        if isinstance(val, (int, np.integer)) and int(val) >= 1:
            return int(val)
    return 1


# ----------------------------------------------------------------------------
# Fused kernel: siamese Q/K projection + extended-key attention + attn@V,
# attn@TSP + post-MLP, all in one grid step per batch tile.
# ----------------------------------------------------------------------------
def _fused_kernel(qk_ref, v_ref, tsp_ref, wqk_ref, w12_ref, w3_ref, cvec_ref,
                  out_ref, *, real_positions, dummy_positions):
    f32 = jnp.float32
    bt, Lq, twoD = out_ref.shape
    D = twoD // 2
    NQ = bt * Lq
    Lk = v_ref.shape[1]                 # number of real support keys
    Lkp = qk_ref.shape[1] - Lq          # sublane-padded key rows inside qk_ref
    Ltsp = tsp_ref.shape[1]
    S = Ltsp + 1                        # extended key length (+ trailing dummy)
    inv_temp = 1.0 / float(np.sqrt(D))  # temperature = sqrt(d_model)

    # ---- compile-time one-hot scatter/gather + dummy mask, built from iota
    #      (static supp_class_id) -> zero DMA descriptors, zero HBM constants.
    rk = lax.broadcasted_iota(jnp.int32, (Lkp, S), 0)
    cs = lax.broadcasted_iota(jnp.int32, (Lkp, S), 1)
    sel_scatter = jnp.zeros((Lkp, S), f32)          # key idx -> extended slot
    for kidx, pos in enumerate(real_positions):
        sel_scatter = sel_scatter + jnp.where((rk == kidx) & (cs == pos),
                                              1.0, 0.0)

    rs = lax.broadcasted_iota(jnp.int32, (S, Lk), 0)
    ck = lax.broadcasted_iota(jnp.int32, (S, Lk), 1)
    sel_gather = jnp.zeros((S, Lk), f32)            # extended slot -> key idx
    for kidx, pos in enumerate(real_positions):
        sel_gather = sel_gather + jnp.where((rs == pos) & (ck == kidx),
                                            1.0, 0.0)

    lane = lax.broadcasted_iota(jnp.int32, (1, S), 1)
    dmask = jnp.zeros((1, S), f32)                  # 1.0 at dummy key slots
    for pos in dummy_positions:
        dmask = dmask + jnp.where(lane == pos, 1.0, 0.0)

    # ---- packed small constants: [dummy | b1 | b2 | b3] ---------------------
    dummy_row = cvec_ref[:, :D].astype(f32)         # (1, D) raw, unprojected
    bias12 = cvec_ref[:, D:2 * D].astype(f32)       # (1, D) = [b1 | b2]
    bias3 = cvec_ref[:, 2 * D:].astype(f32)         # (1, D)

    # ---- siamese projection: Q and (zero-padded) K in ONE wqk MXU push ------
    wqk = wqk_ref[...]
    qk = qk_ref[...]                                # (bt, Lq + Lkp, D)
    nrows = bt * (Lq + Lkp)
    proj = jnp.dot(qk.reshape(nrows, D).astype(wqk.dtype), wqk,
                   preferred_element_type=f32).reshape(bt, Lq + Lkp, D)
    q_proj = proj[:, :Lq, :] * inv_temp             # 1/temperature folded in
    k_proj = proj[:, Lq:, :]                        # pad rows are zero

    residual = qk[:, :Lq, :].astype(f32).reshape(NQ, D)
    q_proj_flat = q_proj.reshape(NQ, D)

    # ---- scores on the extended key axis: the static scatter is applied in
    #      score space (no (bt, S, D) k_ext materialization).  Dummy slots use
    #      the *unprojected* dummy parameter, matching the torch module.
    s_real = jnp.einsum('bqd,bkd->bqk', q_proj, k_proj,
                        preferred_element_type=f32).reshape(NQ, Lkp)
    s_dummy = jnp.sum(q_proj_flat * dummy_row, axis=-1, keepdims=True)  # (NQ,1)
    scores = (jnp.dot(s_real, sel_scatter, preferred_element_type=f32)
              + s_dummy * dmask)                    # (NQ, S)

    # ---- softmax over extended keys (exact reciprocal for torch parity) -----
    m = jnp.max(scores, axis=-1, keepdims=True)
    e = jnp.exp(scores - m)
    z = jnp.sum(e, axis=-1, keepdims=True)
    attn = e * pl.reciprocal(z, approx=False)
    # TODO(synk): log_softmax and Dropout(p=0.0) in the torch module are dead
    # outputs / no-ops for this forward, so they are omitted.

    # ---- attention readout: dummy V rows are zero and the trailing TSP row is
    #      zero, so V uses gathered real-slot weights and TSP the first Ltsp.
    attn_k = jnp.dot(attn, sel_gather,
                     preferred_element_type=f32).reshape(bt, Lq, Lk)
    out = jnp.einsum('bqk,bkd->bqd', attn_k.astype(v_ref.dtype), v_ref[...],
                     preferred_element_type=f32)                   # (bt, Lq, D)
    attn_t = attn[:, :Ltsp].reshape(bt, Lq, Ltsp)
    tsp_o = jnp.einsum('bqt,btd->bqd', attn_t.astype(tsp_ref.dtype),
                       tsp_ref[...], preferred_element_type=f32)   # (bt, Lq, D)

    # ---- post-MLP: two MXU pushes on lane-concatenated inputs ---------------
    out_flat = out.reshape(NQ, D)
    x12 = jnp.concatenate([out_flat * residual, residual - out_flat], axis=-1)
    o12 = jnp.maximum(
        jnp.dot(x12.astype(w12_ref.dtype), w12_ref[...],
                preferred_element_type=f32) + bias12, 0.0)         # [o1 | o2]
    x3 = jnp.concatenate([o12, residual], axis=-1)                 # (NQ, 2D)
    final = jnp.dot(x3.astype(w3_ref.dtype), w3_ref[...],
                    preferred_element_type=f32) + bias3

    # ---- single packed, denser store: [final | tsp_out] ---------------------
    packed = jnp.concatenate([final.reshape(bt, Lq, D), tsp_o], axis=-1)
    out_ref[...] = packed.astype(out_ref.dtype)


def _attention_fused(qk_in, v, tsp, params, real_positions, dummy_positions,
                     Lq_pad, batch_tile=None):
    B, LqLk, D = qk_in.shape
    Lk = v.shape[1]
    Ltsp = tsp.shape[1]
    S = Ltsp + 1

    if batch_tile is None:
        # v7x has 2 TensorCores/chip: split the batch across them; on 1-TC
        # chips keep a single grid step (no per-step overhead at tiny shapes).
        bt = B // 2 if (_num_tensorcores() >= 2 and B % 2 == 0) else B
    else:
        bt = batch_tile
    assert B % bt == 0, "batch_tile must divide the batch size"
    grid = (B // bt,)

    kernel = functools.partial(_fused_kernel,
                               real_positions=tuple(real_positions),
                               dummy_positions=tuple(dummy_positions))

    # Advisory cost estimate so XLA can overlap neighbours with this tiny call.
    flops = 2 * B * (LqLk * D * D                       # shared Q/K projection
                     + Lq_pad * (LqLk - Lq_pad) * D     # real scores
                     + Lq_pad * (LqLk - Lq_pad) * S     # score scatter
                     + Lq_pad * S * Lk                  # attn gather
                     + Lq_pad * Lk * D                  # attn @ V
                     + Lq_pad * Ltsp * D                # attn @ TSP
                     + 2 * Lq_pad * 2 * D * D)          # fused MLP
    bytes_accessed = sum(int(np.prod(a.shape)) * a.dtype.itemsize for a in
                         (qk_in, v, tsp, params["w_qk_t"], params["w12_pad_t"],
                          params["w3_t"], params["cvec"]))
    bytes_accessed += B * Lq_pad * 2 * D * qk_in.dtype.itemsize

    def seq_spec(L, width):
        return pl.BlockSpec((bt, L, width), lambda i: (i, 0, 0))

    def const_spec(shape):
        zero = (0,) * len(shape)
        return pl.BlockSpec(shape, lambda i: zero)

    return pl.pallas_call(
        kernel,
        out_shape=jax.ShapeDtypeStruct((B, Lq_pad, 2 * D), qk_in.dtype),
        grid=grid,
        in_specs=[
            seq_spec(LqLk, D),             # [q | zero-padded raw k] rows
            seq_spec(Lk, D),               # raw V
            seq_spec(Ltsp, D),             # raw TSP
            const_spec((D, D)),            # W_qk^T (siamese)
            const_spec((2 * D, D)),        # [[W1^T | 0], [0 | W2^T]]
            const_spec((2 * D, D)),        # W3^T
            const_spec((1, 3 * D)),        # [dummy | b1 | b2 | b3]
        ],
        out_specs=seq_spec(Lq_pad, 2 * D), # packed [out | tsp_out]
        compiler_params=pltpu.CompilerParams(
            dimension_semantics=("parallel",)),
        cost_estimate=pl.CostEstimate(flops=int(flops),
                                      transcendentals=int(B * Lq_pad * S),
                                      bytes_accessed=int(bytes_accessed)),
    )(qk_in, v, tsp, params["w_qk_t"], params["w12_pad_t"], params["w3_t"],
      params["cvec"])


# ----------------------------------------------------------------------------
# Full forward (static supp_class_id -> compile-time selection inside kernel)
# ----------------------------------------------------------------------------
def single_head_siamese_attention(params, q, k, v, tsp, supp_class_id,
                                  batch_tile=None):
    B, Lq, D = q.shape
    Lk = k.shape[1]
    Ltsp = tsp.shape[1]
    assert len(supp_class_id) == Ltsp
    real_positions = tuple(s for s, c in enumerate(supp_class_id) if c != 100)
    dummy_positions = tuple(s for s, c in enumerate(supp_class_id)
                            if c == 100) + (Ltsp,)   # + trailing dummy slot
    assert len(real_positions) == Lk and v.shape[1] == Lk

    Lq_pad = _round_up(Lq, 8)
    Lkp = _round_up(Lk, 8)
    q_pad = q if Lq_pad == Lq else jnp.pad(q, ((0, 0), (0, Lq_pad - Lq), (0, 0)))
    k_pad = k if Lkp == Lk else jnp.pad(k, ((0, 0), (0, Lkp - Lk), (0, 0)))
    # One (B, Lq_pad + Lkp, D) input: the siamese Q/K projection becomes a
    # single MXU push in the kernel and one fewer DMA descriptor.
    qk_in = jnp.concatenate([q_pad, k_pad.astype(q.dtype)], axis=1)

    packed = _attention_fused(qk_in, v, tsp, params, real_positions,
                              dummy_positions, Lq_pad, batch_tile=batch_tile)
    return packed[:, :Lq, :D], packed[:, :Lq, D:]


# ----------------------------------------------------------------------------
# Parameter init (matches the torch module's __init__), packed for the kernel
# ----------------------------------------------------------------------------
def init_params(key, d_model):
    Dh = d_model // 2
    ks = jax.random.split(key, 5)

    std_qk = np.sqrt(2.0 / (d_model + d_model))
    w_qk = jax.random.normal(ks[0], (d_model, d_model), jnp.float32) * std_qk
    dummy = jax.random.normal(ks[1], (1, d_model), jnp.float32)

    def linear_init(kk, out_f, in_f):
        bound = 1.0 / np.sqrt(in_f)
        kw, kb = jax.random.split(kk)
        w = jax.random.uniform(kw, (out_f, in_f), jnp.float32, -bound, bound)
        b = jax.random.uniform(kb, (out_f,), jnp.float32, -bound, bound)
        return w, b

    w1, b1 = linear_init(ks[2], Dh, d_model)
    w2, b2 = linear_init(ks[3], Dh, d_model)
    w3, b3 = linear_init(ks[4], d_model, 2 * d_model)

    # Zero-padded [W1^T | 0 ; 0 | W2^T] so the kernel builds [o1|o2] from a
    # single lane-concatenated input with one MXU push.
    w12_pad = jnp.zeros((2 * d_model, d_model), jnp.float32)
    w12_pad = w12_pad.at[:d_model, :Dh].set(w1.T)
    w12_pad = w12_pad.at[d_model:, Dh:].set(w2.T)
    b_packed = jnp.concatenate([b1, b2, b3]).reshape(1, 2 * d_model)

    params = {
        "w_qk_t": jnp.asarray(w_qk.T),
        "dummy": dummy,
        "w12_pad_t": w12_pad,
        "w3_t": jnp.asarray(w3.T),
        "b_packed": b_packed,
    }
    # Packed small-constant row for the kernel: [dummy | b1 | b2 | b3].
    params["cvec"] = jnp.concatenate([dummy, b_packed], axis=-1)
    return params


# ----------------------------------------------------------------------------
# Pure-JAX reference (mirrors the torch forward) for a sanity check
# ----------------------------------------------------------------------------
def _reference_forward(params, q, k, v, tsp, supp_class_id):
    B, Lq, D = q.shape
    Dh = D // 2
    wqk_t = params["w_qk_t"]
    q_p = q @ wqk_t
    k_p = k @ wqk_t
    dummy = jnp.broadcast_to(params["dummy"][None], (B, 1, D))
    zero = jnp.zeros((B, 1, D), q.dtype)
    lk, lv, idx = [], [], 0
    for cid in supp_class_id:
        if cid != 100:
            lk.append(k_p[:, idx:idx + 1]); lv.append(v[:, idx:idx + 1]); idx += 1
        else:
            lk.append(dummy); lv.append(zero)
    k_ext = jnp.concatenate(lk + [dummy], axis=1)
    v_ext = jnp.concatenate(lv + [zero], axis=1)
    tsp_ext = jnp.concatenate([tsp, zero], axis=1)
    scores = jnp.einsum('bqd,bsd->bqs', q_p, k_ext) / np.sqrt(D)
    attn = jax.nn.softmax(scores, axis=-1)
    out = jnp.einsum('bqs,bsd->bqd', attn, v_ext)
    tsp_o = jnp.einsum('bqs,bsd->bqd', attn, tsp_ext)
    w1_t = params["w12_pad_t"][:D, :Dh]
    w2_t = params["w12_pad_t"][D:, Dh:]
    b1 = params["b_packed"][0, :Dh]
    b2 = params["b_packed"][0, Dh:D]
    b3 = params["b_packed"][0, D:]
    o1 = jax.nn.relu((out * q) @ w1_t + b1)
    o2 = jax.nn.relu((q - out) @ w2_t + b2)
    final = jnp.concatenate([o1, o2, q], axis=-1) @ params["w3_t"] + b3
    return final, tsp_o


if __name__ == "__main__":
    key = jax.random.PRNGKey(0)
    B, Lq, D = 2, 8, 32
    supp_class_id = [0, 100, 1, 100, 2]             # 3 real supports, 2 dummies
    Lk = sum(1 for x in supp_class_id if x != 100)  # 3
    Ltsp = len(supp_class_id)                       # 5

    kp, kq, kk, kv, kt = jax.random.split(key, 5)
    params = init_params(kp, D)
    q = jax.random.normal(kq, (B, Lq, D), jnp.float32)
    k = jax.random.normal(kk, (B, Lk, D), jnp.float32)
    v = jax.random.normal(kv, (B, Lk, D), jnp.float32)
    tsp = jax.random.normal(kt, (B, Ltsp, D), jnp.float32)

    out, tsp_out = single_head_siamese_attention(params, q, k, v, tsp,
                                                 supp_class_id)
    jax.block_until_ready((out, tsp_out))
    assert out.shape == (B, Lq, D) and tsp_out.shape == (B, Lq, D)
    assert bool(jnp.all(jnp.isfinite(out))) and bool(jnp.all(jnp.isfinite(tsp_out)))

    # Sanity check against a plain-JAX mirror of the torch forward (tolerance
    # covers TPU default-precision matmul differences in the reference path).
    ref_out, ref_tsp = _reference_forward(params, q, k, v, tsp, supp_class_id)
    err = max(float(jnp.max(jnp.abs(out - ref_out))),
              float(jnp.max(jnp.abs(tsp_out - ref_tsp))))
    assert err < 5e-2, f"mismatch vs reference: {err}"

    print("KERNEL_OK")
</pallas_src>

<mosaic_0001>
module attributes {stable_mosaic.version = 11 : i64} {
  func.func @_fused_kernel(%arg0: i32, %arg1: memref<2x16x32xf32, #tpu.memory_space<vmem>>, %arg2: memref<2x3x32xf32, #tpu.memory_space<vmem>>, %arg3: memref<2x5x32xf32, #tpu.memory_space<vmem>>, %arg4: memref<32x32xf32, #tpu.memory_space<vmem>>, %arg5: memref<64x32xf32, #tpu.memory_space<vmem>>, %arg6: memref<64x32xf32, #tpu.memory_space<vmem>>, %arg7: memref<1x96xf32, #tpu.memory_space<vmem>>, %arg8: memref<2x8x64xf32, #tpu.memory_space<vmem>>) attributes {dimension_semantics = [#tpu.dimension_semantics<parallel>], iteration_bounds = array<i64: 1>, scalar_prefetch = 0 : i64, scratch_operands = 0 : i64, tpu.core_type = #tpu.core_type<tc>, window_params = [{transform_indices = @transform_0, window_bounds = array<i64: 2, 16, 32>}, {transform_indices = @transform_1, window_bounds = array<i64: 2, 3, 32>}, {transform_indices = @transform_2, window_bounds = array<i64: 2, 5, 32>}, {pipeline_mode = #tpu.pipeline_mode<synchronous>, transform_indices = @transform_3, window_bounds = array<i64: 32, 32>}, {pipeline_mode = #tpu.pipeline_mode<synchronous>, transform_indices = @transform_4, window_bounds = array<i64: 64, 32>}, {pipeline_mode = #tpu.pipeline_mode<synchronous>, transform_indices = @transform_5, window_bounds = array<i64: 64, 32>}, {pipeline_mode = #tpu.pipeline_mode<synchronous>, transform_indices = @transform_6, window_bounds = array<i64: 1, 96>}, {transform_indices = @transform_7, window_bounds = array<i64: 2, 8, 64>}]} {
    %0 = tpu.iota {dimensions = array<i32: 0>} : vector<8x6xi32>
    %1 = tpu.iota {dimensions = array<i32: 1>} : vector<8x6xi32>
    %cst = arith.constant 0.000000e+00 : f32
    %2 = vector.broadcast %cst : f32 to vector<8x6xf32>
    %c0_i32 = arith.constant 0 : i32
    %3 = vector.broadcast %c0_i32 : i32 to vector<8x6xi32>
    %4 = arith.cmpi eq, %0, %3 : vector<8x6xi32>
    %c0_i32_0 = arith.constant 0 : i32
    %5 = vector.broadcast %c0_i32_0 : i32 to vector<8x6xi32>
    %6 = arith.cmpi eq, %1, %5 : vector<8x6xi32>
    %7 = arith.andi %4, %6 : vector<8x6xi1>
    %cst_1 = arith.constant 1.000000e+00 : f32
    %cst_2 = arith.constant 0.000000e+00 : f32
    %8 = vector.broadcast %cst_1 : f32 to vector<8x6xf32>
    %9 = vector.broadcast %cst_2 : f32 to vector<8x6xf32>
    %10 = arith.select %7, %8, %9 : vector<8x6xi1>, vector<8x6xf32>
    %11 = arith.addf %2, %10 : vector<8x6xf32>
    %c1_i32 = arith.constant 1 : i32
    %12 = vector.broadcast %c1_i32 : i32 to vector<8x6xi32>
    %13 = arith.cmpi eq, %0, %12 : vector<8x6xi32>
    %c2_i32 = arith.constant 2 : i32
    %14 = vector.broadcast %c2_i32 : i32 to vector<8x6xi32>
    %15 = arith.cmpi eq, %1, %14 : vector<8x6xi32>
    %16 = arith.andi %13, %15 : vector<8x6xi1>
    %cst_3 = arith.constant 1.000000e+00 : f32
    %cst_4 = arith.constant 0.000000e+00 : f32
    %17 = vector.broadcast %cst_3 : f32 to vector<8x6xf32>
    %18 = vector.broadcast %cst_4 : f32 to vector<8x6xf32>
    %19 = arith.select %16, %17, %18 : vector<8x6xi1>, vector<8x6xf32>
    %20 = arith.addf %11, %19 : vector<8x6xf32>
    %c2_i32_5 = arith.constant 2 : i32
    %21 = vector.broadcast %c2_i32_5 : i32 to vector<8x6xi32>
    %22 = arith.cmpi eq, %0, %21 : vector<8x6xi32>
    %c4_i32 = arith.constant 4 : i32
    %23 = vector.broadcast %c4_i32 : i32 to vector<8x6xi32>
    %24 = arith.cmpi eq, %1, %23 : vector<8x6xi32>
    %25 = arith.andi %22, %24 : vector<8x6xi1>
    %cst_6 = arith.constant 1.000000e+00 : f32
    %cst_7 = arith.constant 0.000000e+00 : f32
    %26 = vector.broadcast %cst_6 : f32 to vector<8x6xf32>
    %27 = vector.broadcast %cst_7 : f32 to vector<8x6xf32>
    %28 = arith.select %25, %26, %27 : vector<8x6xi1>, vector<8x6xf32>
    %29 = arith.addf %20, %28 : vector<8x6xf32>
    %30 = tpu.iota {dimensions = array<i32: 0>} : vector<6x3xi32>
    %31 = tpu.iota {dimensions = array<i32: 1>} : vector<6x3xi32>
    %cst_8 = arith.constant 0.000000e+00 : f32
    %32 = vector.broadcast %cst_8 : f32 to vector<6x3xf32>
    %c0_i32_9 = arith.constant 0 : i32
    %33 = vector.broadcast %c0_i32_9 : i32 to vector<6x3xi32>
    %34 = arith.cmpi eq, %30, %33 : vector<6x3xi32>
    %c0_i32_10 = arith.constant 0 : i32
    %35 = vector.broadcast %c0_i32_10 : i32 to vector<6x3xi32>
    %36 = arith.cmpi eq, %31, %35 : vector<6x3xi32>
    %37 = arith.andi %34, %36 : vector<6x3xi1>
    %cst_11 = arith.constant 1.000000e+00 : f32
    %cst_12 = arith.constant 0.000000e+00 : f32
    %38 = vector.broadcast %cst_11 : f32 to vector<6x3xf32>
    %39 = vector.broadcast %cst_12 : f32 to vector<6x3xf32>
    %40 = arith.select %37, %38, %39 : vector<6x3xi1>, vector<6x3xf32>
    %41 = arith.addf %32, %40 : vector<6x3xf32>
    %c2_i32_13 = arith.constant 2 : i32
    %42 = vector.broadcast %c2_i32_13 : i32 to vector<6x3xi32>
    %43 = arith.cmpi eq, %30, %42 : vector<6x3xi32>
    %c1_i32_14 = arith.constant 1 : i32
    %44 = vector.broadcast %c1_i32_14 : i32 to vector<6x3xi32>
    %45 = arith.cmpi eq, %31, %44 : vector<6x3xi32>
    %46 = arith.andi %43, %45 : vector<6x3xi1>
    %cst_15 = arith.constant 1.000000e+00 : f32
    %cst_16 = arith.constant 0.000000e+00 : f32
    %47 = vector.broadcast %cst_15 : f32 to vector<6x3xf32>
    %48 = vector.broadcast %cst_16 : f32 to vector<6x3xf32>
    %49 = arith.select %46, %47, %48 : vector<6x3xi1>, vector<6x3xf32>
    %50 = arith.addf %41, %49 : vector<6x3xf32>
    %c4_i32_17 = arith.constant 4 : i32
    %51 = vector.broadcast %c4_i32_17 : i32 to vector<6x3xi32>
    %52 = arith.cmpi eq, %30, %51 : vector<6x3xi32>
    %c2_i32_18 = arith.constant 2 : i32
    %53 = vector.broadcast %c2_i32_18 : i32 to vector<6x3xi32>
    %54 = arith.cmpi eq, %31, %53 : vector<6x3xi32>
    %55 = arith.andi %52, %54 : vector<6x3xi1>
    %cst_19 = arith.constant 1.000000e+00 : f32
    %cst_20 = arith.constant 0.000000e+00 : f32
    %56 = vector.broadcast %cst_19 : f32 to vector<6x3xf32>
    %57 = vector.broadcast %cst_20 : f32 to vector<6x3xf32>
    %58 = arith.select %55, %56, %57 : vector<6x3xi1>, vector<6x3xf32>
    %59 = arith.addf %50, %58 : vector<6x3xf32>
    %60 = tpu.iota {dimensions = array<i32: 1>} : vector<1x6xi32>
    %cst_21 = arith.constant 0.000000e+00 : f32
    %61 = vector.broadcast %cst_21 : f32 to vector<1x6xf32>
    %c1_i32_22 = arith.constant 1 : i32
    %62 = vector.broadcast %c1_i32_22 : i32 to vector<1x6xi32>
    %63 = arith.cmpi eq, %60, %62 : vector<1x6xi32>
    %cst_23 = arith.constant 1.000000e+00 : f32
    %cst_24 = arith.constant 0.000000e+00 : f32
    %64 = vector.broadcast %cst_23 : f32 to vector<1x6xf32>
    %65 = vector.broadcast %cst_24 : f32 to vector<1x6xf32>
    %66 = arith.select %63, %64, %65 : vector<1x6xi1>, vector<1x6xf32>
    %67 = arith.addf %61, %66 : vector<1x6xf32>
    %c3_i32 = arith.constant 3 : i32
    %68 = vector.broadcast %c3_i32 : i32 to vector<1x6xi32>
    %69 = arith.cmpi eq, %60, %68 : vector<1x6xi32>
    %cst_25 = arith.constant 1.000000e+00 : f32
    %cst_26 = arith.constant 0.000000e+00 : f32
    %70 = vector.broadcast %cst_25 : f32 to vector<1x6xf32>
    %71 = vector.broadcast %cst_26 : f32 to vector<1x6xf32>
    %72 = arith.select %69, %70, %71 : vector<1x6xi1>, vector<1x6xf32>
    %73 = arith.addf %67, %72 : vector<1x6xf32>
    %c5_i32 = arith.constant 5 : i32
    %74 = vector.broadcast %c5_i32 : i32 to vector<1x6xi32>
    %75 = arith.cmpi eq, %60, %74 : vector<1x6xi32>
    %cst_27 = arith.constant 1.000000e+00 : f32
    %cst_28 = arith.constant 0.000000e+00 : f32
    %76 = vector.broadcast %cst_27 : f32 to vector<1x6xf32>
    %77 = vector.broadcast %cst_28 : f32 to vector<1x6xf32>
    %78 = arith.select %75, %76, %77 : vector<1x6xi1>, vector<1x6xf32>
    %79 = arith.addf %73, %78 : vector<1x6xf32>
    %c0 = arith.constant 0 : index
    %c0_29 = arith.constant 0 : index
    %80 = vector.load %arg7[%c0, %c0_29] : memref<1x96xf32, #tpu.memory_space<vmem>>, vector<1x32xf32>
    %c0_30 = arith.constant 0 : index
    %c32 = arith.constant 32 : index
    %81 = vector.load %arg7[%c0_30, %c32] : memref<1x96xf32, #tpu.memory_space<vmem>>, vector<1x32xf32>
    %c0_31 = arith.constant 0 : index
    %c64 = arith.constant 64 : index
    %82 = vector.load %arg7[%c0_31, %c64] : memref<1x96xf32, #tpu.memory_space<vmem>>, vector<1x32xf32>
    %c0_32 = arith.constant 0 : index
    %c0_33 = arith.constant 0 : index
    %83 = vector.load %arg4[%c0_32, %c0_33] : memref<32x32xf32, #tpu.memory_space<vmem>>, vector<32x32xf32>
    %c0_34 = arith.constant 0 : index
    %c0_35 = arith.constant 0 : index
    %c0_36 = arith.constant 0 : index
    %84 = vector.load %arg1[%c0_34, %c0_35, %c0_36] : memref<2x16x32xf32, #tpu.memory_space<vmem>>, vector<2x16x32xf32>
    %85 = vector.shape_cast %84 : vector<2x16x32xf32> to vector<32x32xf32>
    %cst_37 = arith.constant dense<0.000000e+00> : vector<32x32xf32>
    %86 = tpu.matmul %85, %83, %cst_37 {dimension_numbers = #tpu.dot_dimension_numbers<[1], [0], [0], [1], [0, 0, 1, 1], [], []>} : vector<32x32xf32>, vector<32x32xf32>, vector<32x32xf32> -> vector<32x32xf32>
    %87 = vector.shape_cast %86 : vector<32x32xf32> to vector<2x16x32xf32>
    %88 = vector.extract_strided_slice %87 {offsets = [0, 0, 0], sizes = [2, 8, 32], strides = [1, 1, 1]} : vector<2x16x32xf32> to vector<2x8x32xf32>
    %cst_38 = arith.constant 0.176776692 : f32
    %89 = vector.broadcast %cst_38 : f32 to vector<2x8x32xf32>
    %90 = arith.mulf %88, %89 : vector<2x8x32xf32>
    %91 = vector.extract_strided_slice %87 {offsets = [0, 8, 0], sizes = [2, 8, 32], strides = [1, 1, 1]} : vector<2x16x32xf32> to vector<2x8x32xf32>
    %92 = vector.extract_strided_slice %84 {offsets = [0, 0, 0], sizes = [2, 8, 32], strides = [1, 1, 1]} : vector<2x16x32xf32> to vector<2x8x32xf32>
    %93 = vector.shape_cast %92 : vector<2x8x32xf32> to vector<16x32xf32>
    %94 = vector.shape_cast %90 : vector<2x8x32xf32> to vector<16x32xf32>
    "tpu.trace_start"() <{level = 10 : i32, message = "bqd,bkd->bqk"}> : () -> ()
    %cst_39 = arith.constant dense<0.000000e+00> : vector<2x8x8xf32>
    %95 = tpu.matmul %90, %91, %cst_39 {dimension_numbers = #tpu.dot_dimension_numbers<[2], [2], [1], [1], [0, 0, 0, 1, 1, 1], [0], [0]>} : vector<2x8x32xf32>, vector<2x8x32xf32>, vector<2x8x8xf32> -> vector<2x8x8xf32>
    "tpu.trace_stop"() : () -> ()
    %96 = vector.shape_cast %95 : vector<2x8x8xf32> to vector<16x8xf32>
    %97 = vector.broadcast %80 : vector<1x32xf32> to vector<16x32xf32>
    %98 = arith.mulf %94, %97 : vector<16x32xf32>
    %cst_40 = arith.constant dense<0.000000e+00> : vector<16xf32>
    %99 = vector.multi_reduction <add>, %98, %cst_40 [1] : vector<16x32xf32> to vector<16xf32>
    %100 = vector.shape_cast %99 : vector<16xf32> to vector<16x1xf32>
    %cst_41 = arith.constant dense<0.000000e+00> : vector<16x6xf32>
    %101 = tpu.matmul %96, %29, %cst_41 {dimension_numbers = #tpu.dot_dimension_numbers<[1], [0], [0], [1], [0, 0, 1, 1], [], []>} : vector<16x8xf32>, vector<8x6xf32>, vector<16x6xf32> -> vector<16x6xf32>
    %102 = vector.broadcast %100 : vector<16x1xf32> to vector<16x6xf32>
    %103 = vector.broadcast %79 : vector<1x6xf32> to vector<16x6xf32>
    %104 = arith.mulf %102, %103 : vector<16x6xf32>
    %105 = arith.addf %101, %104 : vector<16x6xf32>
    %cst_42 = arith.constant dense<0xFF800000> : vector<16xf32>
    %106 = vector.multi_reduction <maximumf>, %105, %cst_42 [1] : vector<16x6xf32> to vector<16xf32>
    %107 = vector.shape_cast %106 : vector<16xf32> to vector<16x1xf32>
    %108 = vector.broadcast %107 : vector<16x1xf32> to vector<16x6xf32>
    %109 = arith.subf %105, %108 : vector<16x6xf32>
    %110 = math.exp %109 : vector<16x6xf32>
    %cst_43 = arith.constant dense<0.000000e+00> : vector<16xf32>
    %111 = vector.multi_reduction <add>, %110, %cst_43 [1] : vector<16x6xf32> to vector<16xf32>
    %112 = vector.shape_cast %111 : vector<16xf32> to vector<16x1xf32>
    %113 = tpu.reciprocal %112 : vector<16x1xf32> -> vector<16x1xf32>
    %114 = vector.broadcast %113 : vector<16x1xf32> to vector<16x6xf32>
    %115 = arith.mulf %110, %114 : vector<16x6xf32>
    %cst_44 = arith.constant dense<0.000000e+00> : vector<16x3xf32>
    %116 = tpu.matmul %115, %59, %cst_44 {dimension_numbers = #tpu.dot_dimension_numbers<[1], [0], [0], [1], [0, 0, 1, 1], [], []>} : vector<16x6xf32>, vector<6x3xf32>, vector<16x3xf32> -> vector<16x3xf32>
    %117 = vector.shape_cast %116 : vector<16x3xf32> to vector<2x8x3xf32>
    %c0_45 = arith.constant 0 : index
    %c0_46 = arith.constant 0 : index
    %c0_47 = arith.constant 0 : index
    %118 = vector.load %arg2[%c0_45, %c0_46, %c0_47] : memref<2x3x32xf32, #tpu.memory_space<vmem>>, vector<2x3x32xf32>
    "tpu.trace_start"() <{level = 10 : i32, message = "bqk,bkd->bqd"}> : () -> ()
    %cst_48 = arith.constant dense<0.000000e+00> : vector<2x8x32xf32>
    %119 = tpu.matmul %117, %118, %cst_48 {dimension_numbers = #tpu.dot_dimension_numbers<[2], [1], [1], [2], [0, 0, 0, 1, 1, 2], [0], [0]>} : vector<2x8x3xf32>, vector<2x3x32xf32>, vector<2x8x32xf32> -> vector<2x8x32xf32>
    "tpu.trace_stop"() : () -> ()
    %120 = vector.extract_strided_slice %115 {offsets = [0, 0], sizes = [16, 5], strides = [1, 1]} : vector<16x6xf32> to vector<16x5xf32>
    %121 = vector.shape_cast %120 : vector<16x5xf32> to vector<2x8x5xf32>
    %c0_49 = arith.constant 0 : index
    %c0_50 = arith.constant 0 : index
    %c0_51 = arith.constant 0 : index
    %122 = vector.load %arg3[%c0_49, %c0_50, %c0_51] : memref<2x5x32xf32, #tpu.memory_space<vmem>>, vector<2x5x32xf32>
    "tpu.trace_start"() <{level = 10 : i32, message = "bqt,btd->bqd"}> : () -> ()
    %cst_52 = arith.constant dense<0.000000e+00> : vector<2x8x32xf32>
    %123 = tpu.matmul %121, %122, %cst_52 {dimension_numbers = #tpu.dot_dimension_numbers<[2], [1], [1], [2], [0, 0, 0, 1, 1, 2], [0], [0]>} : vector<2x8x5xf32>, vector<2x5x32xf32>, vector<2x8x32xf32> -> vector<2x8x32xf32>
    "tpu.trace_stop"() : () -> ()
    %124 = vector.shape_cast %119 : vector<2x8x32xf32> to vector<16x32xf32>
    %125 = arith.mulf %124, %93 : vector<16x32xf32>
    %126 = arith.subf %93, %124 : vector<16x32xf32>
    %127 = tpu.concatenate %125, %126 in 1 : vector<16x32xf32>, vector<16x32xf32> -> vector<16x64xf32>
    %c0_53 = arith.constant 0 : index
    %c0_54 = arith.constant 0 : index
    %128 = vector.load %arg5[%c0_53, %c0_54] : memref<64x32xf32, #tpu.memory_space<vmem>>, vector<64x32xf32>
    %cst_55 = arith.constant dense<0.000000e+00> : vector<16x32xf32>
    %129 = tpu.matmul %127, %128, %cst_55 {dimension_numbers = #tpu.dot_dimension_numbers<[1], [0], [0], [1], [0, 0, 1, 1], [], []>} : vector<16x64xf32>, vector<64x32xf32>, vector<16x32xf32> -> vector<16x32xf32>
    %130 = vector.broadcast %81 : vector<1x32xf32> to vector<16x32xf32>
    %131 = arith.addf %129, %130 : vector<16x32xf32>
    %cst_56 = arith.constant 0.000000e+00 : f32
    %132 = vector.broadcast %cst_56 : f32 to vector<16x32xf32>
    %133 = arith.maximumf %131, %132 : vector<16x32xf32>
    %134 = tpu.concatenate %133, %93 in 1 : vector<16x32xf32>, vector<16x32xf32> -> vector<16x64xf32>
    %c0_57 = arith.constant 0 : index
    %c0_58 = arith.constant 0 : index
    %135 = vector.load %arg6[%c0_57, %c0_58] : memref<64x32xf32, #tpu.memory_space<vmem>>, vector<64x32xf32>
    %cst_59 = arith.constant dense<0.000000e+00> : vector<16x32xf32>
    %136 = tpu.matmul %134, %135, %cst_59 {dimension_numbers = #tpu.dot_dimension_numbers<[1], [0], [0], [1], [0, 0, 1, 1], [], []>} : vector<16x64xf32>, vector<64x32xf32>, vector<16x32xf32> -> vector<16x32xf32>
    %137 = vector.broadcast %82 : vector<1x32xf32> to vector<16x32xf32>
    %138 = arith.addf %136, %137 : vector<16x32xf32>
    %139 = vector.shape_cast %138 : vector<16x32xf32> to vector<2x8x32xf32>
    %140 = tpu.concatenate %139, %123 in 2 : vector<2x8x32xf32>, vector<2x8x32xf32> -> vector<2x8x64xf32>
    %c0_60 = arith.constant 0 : index
    %c0_61 = arith.constant 0 : index
    %c0_62 = arith.constant 0 : index
    %141 = vector.load %arg8[%c0_60, %c0_61, %c0_62] : memref<2x8x64xf32, #tpu.memory_space<vmem>>, vector<2x8x64xf32>
    tpu.vector_store %arg8[%c0_60, %c0_61, %c0_62], %140 {strides = array<i32>} : memref<2x8x64xf32, #tpu.memory_space<vmem>>, vector<2x8x64xf32>,
    return
  }
  func.func @transform_0(%arg0: i32) -> (i32, i32, i32) {
    %c0_i32 = arith.constant 0 : i32
    %c0_i32_0 = arith.constant 0 : i32
    %c0_i32_1 = arith.constant 0 : i32
    return %arg0, %c0_i32, %c0_i32_0 : i32, i32, i32
  }
  func.func @transform_1(%arg0: i32) -> (i32, i32, i32) {
    %c0_i32 = arith.constant 0 : i32
    %c0_i32_0 = arith.constant 0 : i32
    %c0_i32_1 = arith.constant 0 : i32
    return %arg0, %c0_i32, %c0_i32_0 : i32, i32, i32
  }
  func.func @transform_2(%arg0: i32) -> (i32, i32, i32) {
    %c0_i32 = arith.constant 0 : i32
    %c0_i32_0 = arith.constant 0 : i32
    %c0_i32_1 = arith.constant 0 : i32
    return %arg0, %c0_i32, %c0_i32_0 : i32, i32, i32
  }
  func.func @transform_3(%arg0: i32) -> (i32, i32) {
    %c0_i32 = arith.constant 0 : i32
    %c0_i32_0 = arith.constant 0 : i32
    %c0_i32_1 = arith.constant 0 : i32
    return %c0_i32, %c0_i32_0 : i32, i32
  }
  func.func @transform_4(%arg0: i32) -> (i32, i32) {
    %c0_i32 = arith.constant 0 : i32
    %c0_i32_0 = arith.constant 0 : i32
    %c0_i32_1 = arith.constant 0 : i32
    return %c0_i32, %c0_i32_0 : i32, i32
  }
  func.func @transform_5(%arg0: i32) -> (i32, i32) {
    %c0_i32 = arith.constant 0 : i32
    %c0_i32_0 = arith.constant 0 : i32
    %c0_i32_1 = arith.constant 0 : i32
    return %c0_i32, %c0_i32_0 : i32, i32
  }
  func.func @transform_6(%arg0: i32) -> (i32, i32) {
    %c0_i32 = arith.constant 0 : i32
    %c0_i32_0 = arith.constant 0 : i32
    %c0_i32_1 = arith.constant 0 : i32
    return %c0_i32, %c0_i32_0 : i32, i32
  }
  func.func @transform_7(%arg0: i32) -> (i32, i32, i32) {
    %c0_i32 = arith.constant 0 : i32
    %c0_i32_0 = arith.constant 0 : i32
    %c0_i32_1 = arith.constant 0 : i32
    return %arg0, %c0_i32, %c0_i32_0 : i32, i32, i32
  }
}

</mosaic_0001>

<llo_original>
// kernel: tpu_custom_call.1
$region0: #{tpu_custom_call.1}
  #allocation0 [shape = 'u32[]', space=smem, size = 0x4, offset = 0x4, fixed_abs, tag = 'smem constant byte address 0x4 - core index']
  #allocation1 [shape = 'u32[144,128]{1,0:T(1,128)}', space=vmem, size = 0x12000, scoped, tag = 'internal scratch']
  %s0 = inlined_call_operand.vmem [shape: f32[2,16,32], index: 0, kind: input, shape index: {}]
  %s1 = inlined_call_operand.vmem [shape: f32[2,3,32], index: 1, kind: input, shape index: {}]
  %s2 = inlined_call_operand.vmem [shape: f32[2,5,32], index: 2, kind: input, shape index: {}]
  %s3 = inlined_call_operand.vmem [shape: f32[32,32], index: 3, kind: input, shape index: {}]
  %s4 = inlined_call_operand.vmem [shape: f32[64,32], index: 4, kind: input, shape index: {}]
  %s5 = inlined_call_operand.vmem [shape: f32[64,32], index: 5, kind: input, shape index: {}]
  %s6 = inlined_call_operand.vmem [shape: f32[1,96], index: 6, kind: input, shape index: {}]
  %s7 = inlined_call_operand.hbm [shape: f32[2,8,64], index: 7, kind: output, shape index: {}]
  %s8 = sld [smem:[#allocation0]]
  $region38: #{tpu_custom_call.1} parent=0
    _
  %s10 = ssub.s32 1, %s8
  %s11 = scalar_select 0, %s10, %s8
  $region1: #{tpu_custom_call.1} parent=0
    #allocation2 [shape = 'u8[8192]{0}', space=vmem, size = 0x2000, scoped, tag = 'output window, operand 0, single buffered']
    #allocation3 [shape = 's32[1]{0}', space=sflag, size = 0x4, scoped, tag = 'scoped memory for tpu_custom_call.1']
    %12 = vsyncpa [#allocation3], 0
    // Predicated region
    $region2: #{tpu_custom_call.1} parent=1 // pred_check
      _
    $region3: #{tpu_custom_call.1} parent=1 // pred_check_branch
      %14 = sbr.rel (0) target = $region5
    $region4: #{tpu_custom_call.1} parent=1 // pred_region
      _
    $region5: #{tpu_custom_call.1} parent=1 // pred_fallthru
      _
    // Predicated region
    $region6: #{tpu_custom_call.1} parent=1 // pred_check
      _
    $region7: #{tpu_custom_call.1} parent=1 // pred_check_branch
      %16 = sbr.rel (0) target = $region9
    $region8: #{tpu_custom_call.1} parent=1 // pred_region
      _
    $region9: #{tpu_custom_call.1} parent=1 // pred_fallthru
      _
    // Predicated region
    $region10: #{tpu_custom_call.1} parent=1 // pred_check
      _
    $region11: #{tpu_custom_call.1} parent=1 // pred_check_branch
      %18 = sbr.rel (0) target = $region13
    $region12: #{tpu_custom_call.1} parent=1 // pred_region
      _
    $region13: #{tpu_custom_call.1} parent=1 // pred_fallthru
      _
    // Predicated region
    $region14: #{tpu_custom_call.1} parent=1 // pred_check
      _
    $region15: #{tpu_custom_call.1} parent=1 // pred_check_branch
      %20 = sbr.rel (0) target = $region17
    $region16: #{tpu_custom_call.1} parent=1 // pred_region
      _
    $region17: #{tpu_custom_call.1} parent=1 // pred_fallthru
      _
    // Predicated region
    $region18: #{tpu_custom_call.1} parent=1 // pred_check
      _
    $region19: #{tpu_custom_call.1} parent=1 // pred_check_branch
      %22 = sbr.rel (0) target = $region21
    $region20: #{tpu_custom_call.1} parent=1 // pred_region
      _
    $region21: #{tpu_custom_call.1} parent=1 // pred_fallthru
      _
    // Predicated region
    $region22: #{tpu_custom_call.1} parent=1 // pred_check
      _
    $region23: #{tpu_custom_call.1} parent=1 // pred_check_branch
      %24 = sbr.rel (0) target = $region25
    $region24: #{tpu_custom_call.1} parent=1 // pred_region
      _
    $region25: #{tpu_custom_call.1} parent=1 // pred_fallthru
      _
    // Predicated region
    $region26: #{tpu_custom_call.1} parent=1 // pred_check
      _
    $region27: #{tpu_custom_call.1} parent=1 // pred_check_branch
      %26 = sbr.rel (0) target = $region29
    $region28: #{tpu_custom_call.1} parent=1 // pred_region
      _
    $region29: #{tpu_custom_call.1} parent=1 // pred_fallthru
      _
    %v27 = vlaneseq
    %v28 = vshrl.u32 %v27, 7
    %v29 = vlaneseq
    %v30 = vand.u32 %v29, 127
    %vm31 = vcmp.eq.s32.totalorder %v28, 0
    %vm32 = vcmp.eq.s32.totalorder %v30, 0
    %vm33 = vmand %vm31, %vm32
    %v34 = vsel %vm33, 1.0, 0.0
    %v35 = vadd.f32 %v34, 0.0
    %vm36 = vcmp.eq.s32.totalorder %v28, 1
    %vm37 = vcmp.eq.s32.totalorder %v30, 2
    %vm38 = vmand %vm36, %vm37
    %v39 = vsel %vm38, 1.0, 0.0
    %v40 = vadd.f32 %v35, %v39
    %vm41 = vcmp.eq.s32.totalorder %v28, 2
    %vm42 = vcmp.eq.s32.totalorder %v30, 4
    %vm43 = vmand %vm41, %vm42
    %v44 = vsel %vm43, 1.0, 0.0
    %v45 = vadd.f32 %v40, %v44
    %vm46 = vcmp.eq.s32.totalorder %v30, 1
    %vm47 = vmand %vm41, %vm46
    %v48 = vsel %vm47, 1.0, 0.0
    %v49 = vadd.f32 %v35, %v48
    %vm50 = vcmp.eq.s32.totalorder %v28, 4
    %vm51 = vmand %vm50, %vm37
    %v52 = vsel %vm51, 1.0, 0.0
    %v53 = vadd.f32 %v49, %v52
    %v54 = vsel %vm46, 1.0, 0.0
    %v55 = vadd.f32 %v54, 0.0
    %vm56 = vcmp.eq.s32.totalorder %v30, 3
    %v57 = vsel %vm56, 1.0, 0.0
    %v58 = vadd.f32 %v55, %v57
    %vm59 = vcmp.eq.s32.totalorder %v30, 5
    %v60 = vsel %vm59, 1.0, 0.0
    %v61 = vadd.f32 %v58, %v60
    %v62 = vld [vmem:[%s6] sm:$0x1]
    %v63 = vld [vmem:[%s3] sm:$0xff]
    %v64 = vld [vmem:[%s3 + $0x8] sm:$0xff]
    %v65 = vld [vmem:[%s3 + $0x10] sm:$0xff]
    %v66 = vld [vmem:[%s3 + $0x18] sm:$0xff]
    %v67 = vld [vmem:[%s0] sm:$0xff]
    %v68 = vld [vmem:[%s0 + $0x8] sm:$0xff]
    %v69 = vld [vmem:[%s0 + $0x10] sm:$0xff]
    %v70 = vld [vmem:[%s0 + $0x18] sm:$0xff]
    %vm71 = vcmask 261120
    %v73 = vsel %vm71, %v67, 0
    %v76 = vsel %vm71, %v68, 0
    %v79 = vsel %vm71, %v69, 0
    %v82 = vsel %vm71, %v70, 0
    %84 = vmatprep.subr.mxu0 0.0
    %85 = vmatpush1.msra.mxu0 %v63
    %86 = vmatprep.subr.mxu0 0.0
    %87 = vmatpush1.msra.mxu0 %v64
    %88 = vmatprep.subr.mxu0 0.0
    %89 = vmatpush1.msra.mxu0 %v65
    %90 = vmatprep.subr.mxu0 0.0
    %91 = vmatpush1.msra.mxu0 %v66
    %92 = vmatprep.subr.mxu0 0.0
    %93 = vmatpush1.msra.mxu0 0.0
    %94 = vmatprep.subr.mxu0 0.0
    %95 = vmatpush1.msra.mxu0 0.0
    %96 = vmatprep.subr.mxu0 0.0
    %97 = vmatpush1.msra.mxu0 0.0
    %98 = vmatprep.subr.mxu0 0.0
    %99 = vmatpush1.msra.mxu0 0.0
    %100 = vmatprep.subr.mxu0 0.0
    %101 = vmatpush1.msra.mxu0 0.0
    %102 = vmatprep.subr.mxu0 0.0
    %103 = vmatpush1.msra.mxu0 0.0
    %104 = vmatprep.subr.mxu0 0.0
    %105 = vmatpush1.msra.mxu0 0.0
    %106 = vmatprep.subr.mxu0 0.0
    %107 = vmatpush1.msra.mxu0 0.0
    %108 = vmatprep.subr.mxu0 0.0
    %109 = vmatpush1.msra.mxu0 0.0
    %110 = vmatprep.subr.mxu0 0.0
    %111 = vmatpush1.msra.mxu0 0.0
    %112 = vmatprep.subr.mxu0 0.0
    %113 = vmatpush1.msra.mxu0 0.0
    %114 = vmatprep.subr.mxu0 0.0
    %115 = vmatpush1.msra.mxu0 0.0
    %116 = vmatprep.subr.mxu0 0.0
    %117 = vmatpush1.msra.mxu0 0.0
    %118 = vmatprep.subr.mxu0 0.0
    %119 = vmatpush1.msra.mxu0 0.0
    %120 = vmatprep.subr.mxu0 0.0
    %121 = vmatpush1.msra.mxu0 0.0
    %122 = vmatprep.subr.mxu0 0.0
    %123 = vmatpush1.msra.mxu0 0.0
    %124 = vmatprep.subr.mxu0 0.0
    %125 = vmatpush1.msra.mxu0 0.0
    %126 = vmatprep.subr.mxu0 0.0
    %127 = vmatpush1.msra.mxu0 0.0
    %128 = vmatprep.subr.mxu0 0.0
    %129 = vmatpush1.msra.mxu0 0.0
    %130 = vmatprep.subr.mxu0 0.0
    %131 = vmatpush1.msra.mxu0 0.0
    %132 = vmatprep.subr.mxu0 0.0
    %133 = vmatpush1.msra.mxu0 0.0
    %134 = vmatprep.subr.mxu0 0.0
    %135 = vmatpush1.msra.mxu0 0.0
    %136 = vmatprep.subr.mxu0 0.0
    %137 = vmatpush1.msra.mxu0 0.0
    %138 = vmatprep.subr.mxu0 0.0
    %139 = vmatpush1.msra.mxu0 0.0
    %140 = vmatprep.subr.mxu0 0.0
    %141 = vmatpush1.msra.mxu0 0.0
    %142 = vmatprep.subr.mxu0 0.0
    %143 = vmatpush1.msra.mxu0 0.0
    %144 = vmatprep.subr.mxu0 0.0
    %145 = vmatpush1.msra.mxu0 0.0
    %146 = vmatprep.subr.mxu0 0.0
    %147 = vmatpush1.msra.mxu0 0.0
    %148 = vmatprep.mubr.f32.mxu0 0.0
    %149 = vmatmul.mubr.f32.gmra.mrb[0].mxu0 %v73
    %v150 = vpop.f32.mrb[0].mxu0
    %v151 = vadd.f32 0.0, %v150
    %v152 = vpop.f32.mrb[0].mxu0
    %153 = vmatprep.mubr.f32.mxu0 0.0
    %154 = vmatmul.mubr.f32.gmra.mrb[0].mxu0 %v76
    %v155 = vpop.f32.mrb[0].mxu0
    %v156 = vadd.f32 0.0, %v155
    %v157 = vpop.f32.mrb[0].mxu0
    %158 = vmatprep.mubr.f32.mxu0 0.0
    %159 = vmatmul.mubr.f32.gmra.mrb[0].mxu0 %v79
    %v160 = vpop.f32.mrb[0].mxu0
    %v161 = vadd.f32 0.0, %v160
    %v162 = vpop.f32.mrb[0].mxu0
    %163 = vmatprep.mubr.f32.mxu0 0.0
    %164 = vmatmul.mubr.f32.gmra.mrb[0].mxu0 %v82
    %v165 = vpop.f32.mrb[0].mxu0
    %v166 = vadd.f32 0.0, %v165
    %v167 = vpop.f32.mrb[0].mxu0
    %168 = vdwg.mxu0
    %v169 = vmul.f32 %v151, 0.17677669
    %v170 = vmul.f32 %v161, 0.17677669
    %v172 = vsel %vm71, %v169, 0
    %v175 = vsel %vm71, %v156, 0
    %177 = vmatprep.subr.mxu0 0.0
    %178 = vmatpush1.xpose.msra.mxu0 %v175
    %179 = vmatprep.subr.mxu0 0.0
    %180 = vmatpush1.xpose.msra.mxu0 0.0
    %181 = vmatprep.subr.mxu0 0.0
    %182 = vmatpush1.xpose.msra.mxu0 0.0
    %183 = vmatprep.subr.mxu0 0.0
    %184 = vmatpush1.xpose.msra.mxu0 0.0
    %185 = vmatprep.subr.mxu0 0.0
    %186 = vmatpush1.xpose.msra.mxu0 0.0
    %187 = vmatprep.subr.mxu0 0.0
    %188 = vmatpush1.xpose.msra.mxu0 0.0
    %189 = vmatprep.subr.mxu0 0.0
    %190 = vmatpush1.xpose.msra.mxu0 0.0
    %191 = vmatprep.subr.mxu0 0.0
    %192 = vmatpush1.xpose.msra.mxu0 0.0
    %193 = vmatprep.subr.mxu0 0.0
    %194 = vmatpush1.xpose.msra.mxu0 0.0
    %195 = vmatprep.subr.mxu0 0.0
    %196 = vmatpush1.xpose.msra.mxu0 0.0
    %197 = vmatprep.subr.mxu0 0.0
    %198 = vmatpush1.xpose.msra.mxu0 0.0
    %199 = vmatprep.subr.mxu0 0.0
    %200 = vmatpush1.xpose.msra.mxu0 0.0
    %201 = vmatprep.subr.mxu0 0.0
    %202 = vmatpush1.xpose.msra.mxu0 0.0
    %203 = vmatprep.subr.mxu0 0.0
    %204 = vmatpush1.xpose.msra.mxu0 0.0
    %205 = vmatprep.subr.mxu0 0.0
    %206 = vmatpush1.xpose.msra.mxu0 0.0
    %207 = vmatprep.subr.mxu0 0.0
    %208 = vmatpush1.xpose.msra.mxu0 0.0
    %209 = vmatprep.subr.mxu0 0.0
    %210 = vmatpush1.xpose.msra.mxu0 0.0
    %211 = vmatprep.subr.mxu0 0.0
    %212 = vmatpush1.xpose.msra.mxu0 0.0
    %213 = vmatprep.subr.mxu0 0.0
    %214 = vmatpush1.xpose.msra.mxu0 0.0
    %215 = vmatprep.subr.mxu0 0.0
    %216 = vmatpush1.xpose.msra.mxu0 0.0
    %217 = vmatprep.subr.mxu0 0.0
    %218 = vmatpush1.xpose.msra.mxu0 0.0
    %219 = vmatprep.subr.mxu0 0.0
    %220 = vmatpush1.xpose.msra.mxu0 0.0
    %221 = vmatprep.subr.mxu0 0.0
    %222 = vmatpush1.xpose.msra.mxu0 0.0
    %223 = vmatprep.subr.mxu0 0.0
    %224 = vmatpush1.xpose.msra.mxu0 0.0
    %225 = vmatprep.subr.mxu0 0.0
    %226 = vmatpush1.xpose.msra.mxu0 0.0
    %227 = vmatprep.subr.mxu0 0.0
    %228 = vmatpush1.xpose.msra.mxu0 0.0
    %229 = vmatprep.subr.mxu0 0.0
    %230 = vmatpush1.xpose.msra.mxu0 0.0
    %231 = vmatprep.subr.mxu0 0.0
    %232 = vmatpush1.xpose.msra.mxu0 0.0
    %233 = vmatprep.subr.mxu0 0.0
    %234 = vmatpush1.xpose.msra.mxu0 0.0
    %235 = vmatprep.subr.mxu0 0.0
    %236 = vmatpush1.xpose.msra.mxu0 0.0
    %237 = vmatprep.subr.mxu0 0.0
    %238 = vmatpush1.xpose.msra.mxu0 0.0
    %239 = vmatprep.subr.mxu0 0.0
    %240 = vmatpush1.xpose.msra.mxu0 0.0
    %241 = vmatprep.mubr.f32.mxu0 0.0
    %242 = vmatmul.mubr.f32.gmra.mrb[0].mxu0 %v172
    %v243 = vpop.f32.mrb[0].mxu0
    %v244 = vadd.f32 0.0, %v243
    %v245 = vpop.f32.mrb[0].mxu0
    %246 = vdwg.mxu0
    %v248 = vsel %vm71, %v170, 0
    %v251 = vsel %vm71, %v166, 0
    %253 = vmatprep.subr.mxu0 0.0
    %254 = vmatpush1.xpose.msra.mxu0 %v251
    %255 = vmatprep.subr.mxu0 0.0
    %256 = vmatpush1.xpose.msra.mxu0 0.0
    %257 = vmatprep.subr.mxu0 0.0
    %258 = vmatpush1.xpose.msra.mxu0 0.0
    %259 = vmatprep.subr.mxu0 0.0
    %260 = vmatpush1.xpose.msra.mxu0 0.0
    %261 = vmatprep.subr.mxu0 0.0
    %262 = vmatpush1.xpose.msra.mxu0 0.0
    %263 = vmatprep.subr.mxu0 0.0
    %264 = vmatpush1.xpose.msra.mxu0 0.0
    %265 = vmatprep.subr.mxu0 0.0
    %266 = vmatpush1.xpose.msra.mxu0 0.0
    %267 = vmatprep.subr.mxu0 0.0
    %268 = vmatpush1.xpose.msra.mxu0 0.0
    %269 = vmatprep.subr.mxu0 0.0
    %270 = vmatpush1.xpose.msra.mxu0 0.0
    %271 = vmatprep.subr.mxu0 0.0
    %272 = vmatpush1.xpose.msra.mxu0 0.0
    %273 = vmatprep.subr.mxu0 0.0
    %274 = vmatpush1.xpose.msra.mxu0 0.0
    %275 = vmatprep.subr.mxu0 0.0
    %276 = vmatpush1.xpose.msra.mxu0 0.0
    %277 = vmatprep.subr.mxu0 0.0
    %278 = vmatpush1.xpose.msra.mxu0 0.0
    %279 = vmatprep.subr.mxu0 0.0
    %280 = vmatpush1.xpose.msra.mxu0 0.0
    %281 = vmatprep.subr.mxu0 0.0
    %282 = vmatpush1.xpose.msra.mxu0 0.0
    %283 = vmatprep.subr.mxu0 0.0
    %284 = vmatpush1.xpose.msra.mxu0 0.0
    %285 = vmatprep.subr.mxu0 0.0
    %286 = vmatpush1.xpose.msra.mxu0 0.0
    %287 = vmatprep.subr.mxu0 0.0
    %288 = vmatpush1.xpose.msra.mxu0 0.0
    %289 = vmatprep.subr.mxu0 0.0
    %290 = vmatpush1.xpose.msra.mxu0 0.0
    %291 = vmatprep.subr.mxu0 0.0
    %292 = vmatpush1.xpose.msra.mxu0 0.0
    %293 = vmatprep.subr.mxu0 0.0
    %294 = vmatpush1.xpose.msra.mxu0 0.0
    %295 = vmatprep.subr.mxu0 0.0
    %296 = vmatpush1.xpose.msra.mxu0 0.0
    %297 = vmatprep.subr.mxu0 0.0
    %298 = vmatpush1.xpose.msra.mxu0 0.0
    %299 = vmatprep.subr.mxu0 0.0
    %300 = vmatpush1.xpose.msra.mxu0 0.0
    %301 = vmatprep.subr.mxu0 0.0
    %302 = vmatpush1.xpose.msra.mxu0 0.0
    %303 = vmatprep.subr.mxu0 0.0
    %304 = vmatpush1.xpose.msra.mxu0 0.0
    %305 = vmatprep.subr.mxu0 0.0
    %306 = vmatpush1.xpose.msra.mxu0 0.0
    %307 = vmatprep.subr.mxu0 0.0
    %308 = vmatpush1.xpose.msra.mxu0 0.0
    %309 = vmatprep.subr.mxu0 0.0
    %310 = vmatpush1.xpose.msra.mxu0 0.0
    %311 = vmatprep.subr.mxu0 0.0
    %312 = vmatpush1.xpose.msra.mxu0 0.0
    %313 = vmatprep.subr.mxu0 0.0
    %314 = vmatpush1.xpose.msra.mxu0 0.0
    %315 = vmatprep.subr.mxu0 0.0
    %316 = vmatpush1.xpose.msra.mxu0 0.0
    %317 = vmatprep.mubr.f32.mxu0 0.0
    %318 = vmatmul.mubr.f32.gmra.mrb[0].mxu0 %v248
    %v319 = vpop.f32.mrb[0].mxu0
    %v320 = vadd.f32 0.0, %v319
    %v321 = vpop.f32.mrb[0].mxu0
    %322 = vdwg.mxu0
    %v324 = vlaneseq
    %v325 = vshrl.u32 %v324, 7
    %v326 = vsub.s32 0, %v325
    %v327 = vrot.slane %v62, %v326
    %v329 = vmul.f32 %v169, %v327
    %v330 = vmul.f32 %v170, %v327
    %v331 = vsel %vm71, %v329, 0.0
    %332 = vadd.xlane.f32.xlu0 %v331
    %v333 = vpop.xlane.xlu0 %332
    %v334 = vsel %vm71, %v330, 0.0
    %335 = vadd.xlane.f32.xlu0 %v334
    %v336 = vpop.xlane.xlu0 %335
    %v337 = vmul.f32 %v333, %v61
    %v338 = vmul.f32 %v336, %v61
    %vm339 = vcmask 64512
    %v341 = vsel %vm339, %v244, 0
    %v344 = vsel %vm339, %v320, 0
    %346 = vmatprep.subr.mxu0 0.0
    %347 = vmatpush1.msra.mxu0 %v45
    %348 = vmatprep.subr.mxu0 0.0
    %349 = vmatpush1.msra.mxu0 0.0
    %350 = vmatprep.subr.mxu0 0.0
    %351 = vmatpush1.msra.mxu0 0.0
    %352 = vmatprep.subr.mxu0 0.0
    %353 = vmatpush1.msra.mxu0 0.0
    %354 = vmatprep.subr.mxu0 0.0
    %355 = vmatpush1.msra.mxu0 0.0
    %356 = vmatprep.subr.mxu0 0.0
    %357 = vmatpush1.msra.mxu0 0.0
    %358 = vmatprep.subr.mxu0 0.0
    %359 = vmatpush1.msra.mxu0 0.0
    %360 = vmatprep.subr.mxu0 0.0
    %361 = vmatpush1.msra.mxu0 0.0
    %362 = vmatprep.subr.mxu0 0.0
    %363 = vmatpush1.msra.mxu0 0.0
    %364 = vmatprep.subr.mxu0 0.0
    %365 = vmatpush1.msra.mxu0 0.0
    %366 = vmatprep.subr.mxu0 0.0
    %367 = vmatpush1.msra.mxu0 0.0
    %368 = vmatprep.subr.mxu0 0.0
    %369 = vmatpush1.msra.mxu0 0.0
    %370 = vmatprep.subr.mxu0 0.0
    %371 = vmatpush1.msra.mxu0 0.0
    %372 = vmatprep.subr.mxu0 0.0
    %373 = vmatpush1.msra.mxu0 0.0
    %374 = vmatprep.subr.mxu0 0.0
    %375 = vmatpush1.msra.mxu0 0.0
    %376 = vmatprep.subr.mxu0 0.0
    %377 = vmatpush1.msra.mxu0 0.0
    %378 = vmatprep.subr.mxu0 0.0
    %379 = vmatpush1.msra.mxu0 0.0
    %380 = vmatprep.subr.mxu0 0.0
    %381 = vmatpush1.msra.mxu0 0.0
    %382 = vmatprep.subr.mxu0 0.0
    %383 = vmatpush1.msra.mxu0 0.0
    %384 = vmatprep.subr.mxu0 0.0
    %385 = vmatpush1.msra.mxu0 0.0
    %386 = vmatprep.subr.mxu0 0.0
    %387 = vmatpush1.msra.mxu0 0.0
    %388 = vmatprep.subr.mxu0 0.0
    %389 = vmatpush1.msra.mxu0 0.0
    %390 = vmatprep.subr.mxu0 0.0
    %391 = vmatpush1.msra.mxu0 0.0
    %392 = vmatprep.subr.mxu0 0.0
    %393 = vmatpush1.msra.mxu0 0.0
    %394 = vmatprep.subr.mxu0 0.0
    %395 = vmatpush1.msra.mxu0 0.0
    %396 = vmatprep.subr.mxu0 0.0
    %397 = vmatpush1.msra.mxu0 0.0
    %398 = vmatprep.subr.mxu0 0.0
    %399 = vmatpush1.msra.mxu0 0.0
    %400 = vmatprep.subr.mxu0 0.0
    %401 = vmatpush1.msra.mxu0 0.0
    %402 = vmatprep.subr.mxu0 0.0
    %403 = vmatpush1.msra.mxu0 0.0
    %404 = vmatprep.subr.mxu0 0.0
    %405 = vmatpush1.msra.mxu0 0.0
    %406 = vmatprep.subr.mxu0 0.0
    %407 = vmatpush1.msra.mxu0 0.0
    %408 = vmatprep.subr.mxu0 0.0
    %409 = vmatpush1.msra.mxu0 0.0
    %410 = vmatprep.mubr.f32.mxu0 0.0
    %411 = vmatmul.mubr.f32.gmra.mrb[0].mxu0 %v341
    %v412 = vpop.f32.mrb[0].mxu0
    %v413 = vadd.f32 %v337, %v412
    %v414 = vpop.f32.mrb[0].mxu0
    %415 = vmatprep.mubr.f32.mxu0 0.0
    %416 = vmatmul.mubr.f32.gmra.mrb[0].mxu0 %v344
    %v417 = vpop.f32.mrb[0].mxu0
    %v418 = vadd.f32 %v338, %v417
    %v419 = vpop.f32.mrb[0].mxu0
    %420 = vdwg.mxu0
    %vm421 = vcmask 48128
    %v422 = vsel %vm421, %v413, -inf
    %423 = vmax.xlane.f32.xlu0 %v422
    %v424 = vpop.xlane.xlu0 %423
    %v425 = vsel %vm421, %v418, -inf
    %426 = vmax.xlane.f32.xlu0 %v425
    %v427 = vpop.xlane.xlu0 %426
    %v428 = vsub.f32 %v413, %v424
    %v429 = vsub.f32 %v418, %v427
    %v430 = vmul.f32 %v428, 1.442695
    %v431 = vpow.pop %v430
    %v432 = vmul.f32 %v429, 1.442695
    %v433 = vpow.pop %v432
    %v434 = vsel %vm421, %v431, 0.0
    %435 = vadd.xlane.f32.xlu0 %v434
    %v436 = vpop.xlane.xlu0 %435
    %v437 = vsel %vm421, %v433, 0.0
    %438 = vadd.xlane.f32.xlu0 %v437
    %v439 = vpop.xlane.xlu0 %438
    %v440 = vrcp.pop %v436
    %v441 = vrcp.pop %v439
    %v442 = vmul.f32 %v431, %v440
    %v443 = vmul.f32 %v433, %v441
    %v445 = vsel %vm421, %v442, 0
    %v448 = vsel %vm421, %v443, 0
    %vm450 = vcmask 1045504
    %v452 = vsel %vm450, %v53, 0
    %454 = vmatprep.subr.mxu0 0.0
    %455 = vmatpush1.msra.mxu0 %v452
    %456 = vmatprep.subr.mxu0 0.0
    %457 = vmatpush1.msra.mxu0 0.0
    %458 = vmatprep.subr.mxu0 0.0
    %459 = vmatpush1.msra.mxu0 0.0
    %460 = vmatprep.subr.mxu0 0.0
    %461 = vmatpush1.msra.mxu0 0.0
    %462 = vmatprep.subr.mxu0 0.0
    %463 = vmatpush1.msra.mxu0 0.0
    %464 = vmatprep.subr.mxu0 0.0
    %465 = vmatpush1.msra.mxu0 0.0
    %466 = vmatprep.subr.mxu0 0.0
    %467 = vmatpush1.msra.mxu0 0.0
    %468 = vmatprep.subr.mxu0 0.0
    %469 = vmatpush1.msra.mxu0 0.0
    %470 = vmatprep.subr.mxu0 0.0
    %471 = vmatpush1.msra.mxu0 0.0
    %472 = vmatprep.subr.mxu0 0.0
    %473 = vmatpush1.msra.mxu0 0.0
    %474 = vmatprep.subr.mxu0 0.0
    %475 = vmatpush1.msra.mxu0 0.0
    %476 = vmatprep.subr.mxu0 0.0
    %477 = vmatpush1.msra.mxu0 0.0
    %478 = vmatprep.subr.mxu0 0.0
    %479 = vmatpush1.msra.mxu0 0.0
    %480 = vmatprep.subr.mxu0 0.0
    %481 = vmatpush1.msra.mxu0 0.0
    %482 = vmatprep.subr.mxu0 0.0
    %483 = vmatpush1.msra.mxu0 0.0
    %484 = vmatprep.subr.mxu0 0.0
    %485 = vmatpush1.msra.mxu0 0.0
    %486 = vmatprep.subr.mxu0 0.0
    %487 = vmatpush1.msra.mxu0 0.0
    %488 = vmatprep.subr.mxu0 0.0
    %489 = vmatpush1.msra.mxu0 0.0
    %490 = vmatprep.subr.mxu0 0.0
    %491 = vmatpush1.msra.mxu0 0.0
    %492 = vmatprep.subr.mxu0 0.0
    %493 = vmatpush1.msra.mxu0 0.0
    %494 = vmatprep.subr.mxu0 0.0
    %495 = vmatpush1.msra.mxu0 0.0
    %496 = vmatprep.subr.mxu0 0.0
    %497 = vmatpush1.msra.mxu0 0.0
    %498 = vmatprep.subr.mxu0 0.0
    %499 = vmatpush1.msra.mxu0 0.0
    %500 = vmatprep.subr.mxu0 0.0
    %501 = vmatpush1.msra.mxu0 0.0
    %502 = vmatprep.subr.mxu0 0.0
    %503 = vmatpush1.msra.mxu0 0.0
    %504 = vmatprep.subr.mxu0 0.0
    %505 = vmatpush1.msra.mxu0 0.0
    %506 = vmatprep.subr.mxu0 0.0
    %507 = vmatpush1.msra.mxu0 0.0
    %508 = vmatprep.subr.mxu0 0.0
    %509 = vmatpush1.msra.mxu0 0.0
    %510 = vmatprep.subr.mxu0 0.0
    %511 = vmatpush1.msra.mxu0 0.0
    %512 = vmatprep.subr.mxu0 0.0
    %513 = vmatpush1.msra.mxu0 0.0
    %514 = vmatprep.subr.mxu0 0.0
    %515 = vmatpush1.msra.mxu0 0.0
    %516 = vmatprep.subr.mxu0 0.0
    %517 = vmatpush1.msra.mxu0 0.0
    %518 = vmatprep.mubr.f32.mxu0 0.0
    %519 = vmatmul.mubr.f32.gmra.mrb[0].mxu0 %v445
    %v520 = vpop.f32.mrb[0].mxu0
    %v521 = vadd.f32 0.0, %v520
    %v522 = vpop.f32.mrb[0].mxu0
    %523 = vmatprep.mubr.f32.mxu0 0.0
    %524 = vmatmul.mubr.f32.gmra.mrb[0].mxu0 %v448
    %v525 = vpop.f32.mrb[0].mxu0
    %v526 = vadd.f32 0.0, %v525
    %v527 = vpop.f32.mrb[0].mxu0
    %528 = vdwg.mxu0
    %v529 = vld [vmem:[%s1] sm:$0x7]
    %v530 = vld [vmem:[%s1 + $0x4] sm:$0x7]
    %vm531 = vcmask 23552
    %v533 = vsel %vm531, %v521, 0
    %vm535 = vcmask 1042432
    %v537 = vsel %vm535, %v529, 0
    %539 = vmatprep.subr.mxu0 0.0
    %540 = vmatpush1.msra.mxu0 %v537
    %541 = vmatprep.subr.mxu0 0.0
    %542 = vmatpush1.msra.mxu0 0.0
    %543 = vmatprep.subr.mxu0 0.0
    %544 = vmatpush1.msra.mxu0 0.0
    %545 = vmatprep.subr.mxu0 0.0
    %546 = vmatpush1.msra.mxu0 0.0
    %547 = vmatprep.subr.mxu0 0.0
    %548 = vmatpush1.msra.mxu0 0.0
    %549 = vmatprep.subr.mxu0 0.0
    %550 = vmatpush1.msra.mxu0 0.0
    %551 = vmatprep.subr.mxu0 0.0
    %552 = vmatpush1.msra.mxu0 0.0
    %553 = vmatprep.subr.mxu0 0.0
    %554 = vmatpush1.msra.mxu0 0.0
    %555 = vmatprep.subr.mxu0 0.0
    %556 = vmatpush1.msra.mxu0 0.0
    %557 = vmatprep.subr.mxu0 0.0
    %558 = vmatpush1.msra.mxu0 0.0
    %559 = vmatprep.subr.mxu0 0.0
    %560 = vmatpush1.msra.mxu0 0.0
    %561 = vmatprep.subr.mxu0 0.0
    %562 = vmatpush1.msra.mxu0 0.0
    %563 = vmatprep.subr.mxu0 0.0
    %564 = vmatpush1.msra.mxu0 0.0
    %565 = vmatprep.subr.mxu0 0.0
    %566 = vmatpush1.msra.mxu0 0.0
    %567 = vmatprep.subr.mxu0 0.0
    %568 = vmatpush1.msra.mxu0 0.0
    %569 = vmatprep.subr.mxu0 0.0
    %570 = vmatpush1.msra.mxu0 0.0
    %571 = vmatprep.subr.mxu0 0.0
    %572 = vmatpush1.msra.mxu0 0.0
    %573 = vmatprep.subr.mxu0 0.0
    %574 = vmatpush1.msra.mxu0 0.0
    %575 = vmatprep.subr.mxu0 0.0
    %576 = vmatpush1.msra.mxu0 0.0
    %577 = vmatprep.subr.mxu0 0.0
    %578 = vmatpush1.msra.mxu0 0.0
    %579 = vmatprep.subr.mxu0 0.0
    %580 = vmatpush1.msra.mxu0 0.0
    %581 = vmatprep.subr.mxu0 0.0
    %582 = vmatpush1.msra.mxu0 0.0
    %583 = vmatprep.subr.mxu0 0.0
    %584 = vmatpush1.msra.mxu0 0.0
    %585 = vmatprep.subr.mxu0 0.0
    %586 = vmatpush1.msra.mxu0 0.0
    %587 = vmatprep.subr.mxu0 0.0
    %588 = vmatpush1.msra.mxu0 0.0
    %589 = vmatprep.subr.mxu0 0.0
    %590 = vmatpush1.msra.mxu0 0.0
    %591 = vmatprep.subr.mxu0 0.0
    %592 = vmatpush1.msra.mxu0 0.0
    %593 = vmatprep.subr.mxu0 0.0
    %594 = vmatpush1.msra.mxu0 0.0
    %595 = vmatprep.subr.mxu0 0.0
    %596 = vmatpush1.msra.mxu0 0.0
    %597 = vmatprep.subr.mxu0 0.0
    %598 = vmatpush1.msra.mxu0 0.0
    %599 = vmatprep.subr.mxu0 0.0
    %600 = vmatpush1.msra.mxu0 0.0
    %601 = vmatprep.subr.mxu0 0.0
    %602 = vmatpush1.msra.mxu0 0.0
    %603 = vmatprep.mubr.f32.mxu0 0.0
    %604 = vmatmul.mubr.f32.gmra.mrb[0].mxu0 %v533
    %v605 = vpop.f32.mrb[0].mxu0
    %v606 = vadd.f32 0.0, %v605
    %v607 = vpop.f32.mrb[0].mxu0
    %608 = vdwg.mxu0
    %v610 = vsel %vm531, %v526, 0
    %v613 = vsel %vm535, %v530, 0
    %615 = vmatprep.subr.mxu0 0.0
    %616 = vmatpush1.msra.mxu0 %v613
    %617 = vmatprep.subr.mxu0 0.0
    %618 = vmatpush1.msra.mxu0 0.0
    %619 = vmatprep.subr.mxu0 0.0
    %620 = vmatpush1.msra.mxu0 0.0
    %621 = vmatprep.subr.mxu0 0.0
    %622 = vmatpush1.msra.mxu0 0.0
    %623 = vmatprep.subr.mxu0 0.0
    %624 = vmatpush1.msra.mxu0 0.0
    %625 = vmatprep.subr.mxu0 0.0
    %626 = vmatpush1.msra.mxu0 0.0
    %627 = vmatprep.subr.mxu0 0.0
    %628 = vmatpush1.msra.mxu0 0.0
    %629 = vmatprep.subr.mxu0 0.0
    %630 = vmatpush1.msra.mxu0 0.0
    %631 = vmatprep.subr.mxu0 0.0
    %632 = vmatpush1.msra.mxu0 0.0
    %633 = vmatprep.subr.mxu0 0.0
    %634 = vmatpush1.msra.mxu0 0.0
    %635 = vmatprep.subr.mxu0 0.0
    %636 = vmatpush1.msra.mxu0 0.0
    %637 = vmatprep.subr.mxu0 0.0
    %638 = vmatpush1.msra.mxu0 0.0
    %639 = vmatprep.subr.mxu0 0.0
    %640 = vmatpush1.msra.mxu0 0.0
    %641 = vmatprep.subr.mxu0 0.0
    %642 = vmatpush1.msra.mxu0 0.0
    %643 = vmatprep.subr.mxu0 0.0
    %644 = vmatpush1.msra.mxu0 0.0
    %645 = vmatprep.subr.mxu0 0.0
    %646 = vmatpush1.msra.mxu0 0.0
    %647 = vmatprep.subr.mxu0 0.0
    %648 = vmatpush1.msra.mxu0 0.0
    %649 = vmatprep.subr.mxu0 0.0
    %650 = vmatpush1.msra.mxu0 0.0
    %651 = vmatprep.subr.mxu0 0.0
    %652 = vmatpush1.msra.mxu0 0.0
    %653 = vmatprep.subr.mxu0 0.0
    %654 = vmatpush1.msra.mxu0 0.0
    %655 = vmatprep.subr.mxu0 0.0
    %656 = vmatpush1.msra.mxu0 0.0
    %657 = vmatprep.subr.mxu0 0.0
    %658 = vmatpush1.msra.mxu0 0.0
    %659 = vmatprep.subr.mxu0 0.0
    %660 = vmatpush1.msra.mxu0 0.0
    %661 = vmatprep.subr.mxu0 0.0
    %662 = vmatpush1.msra.mxu0 0.0
    %663 = vmatprep.subr.mxu0 0.0
    %664 = vmatpush1.msra.mxu0 0.0
    %665 = vmatprep.subr.mxu0 0.0
    %666 = vmatpush1.msra.mxu0 0.0
    %667 = vmatprep.subr.mxu0 0.0
    %668 = vmatpush1.msra.mxu0 0.0
    %669 = vmatprep.subr.mxu0 0.0
    %670 = vmatpush1.msra.mxu0 0.0
    %671 = vmatprep.subr.mxu0 0.0
    %672 = vmatpush1.msra.mxu0 0.0
    %673 = vmatprep.subr.mxu0 0.0
    %674 = vmatpush1.msra.mxu0 0.0
    %675 = vmatprep.subr.mxu0 0.0
    %676 = vmatpush1.msra.mxu0 0.0
    %677 = vmatprep.subr.mxu0 0.0
    %678 = vmatpush1.msra.mxu0 0.0
    %679 = vmatprep.mubr.f32.mxu0 0.0
    %680 = vmatmul.mubr.f32.gmra.mrb[0].mxu0 %v610
    %v681 = vpop.f32.mrb[0].mxu0
    %v682 = vadd.f32 0.0, %v681
    %v683 = vpop.f32.mrb[0].mxu0
    %684 = vdwg.mxu0
    %v685 = vld [vmem:[%s2] sm:$0x1f]
    %v686 = vld [vmem:[%s2 + $0x8] sm:$0x1f]
    %vm687 = vcmask 39936
    %v688 = vsel %vm687, %v442, 0
    %vm690 = vcmask 1044480
    %v692 = vsel %vm690, %v685, 0
    %694 = vmatprep.subr.mxu0 0.0
    %695 = vmatpush1.msra.mxu0 %v692
    %696 = vmatprep.subr.mxu0 0.0
    %697 = vmatpush1.msra.mxu0 0.0
    %698 = vmatprep.subr.mxu0 0.0
    %699 = vmatpush1.msra.mxu0 0.0
    %700 = vmatprep.subr.mxu0 0.0
    %701 = vmatpush1.msra.mxu0 0.0
    %702 = vmatprep.subr.mxu0 0.0
    %703 = vmatpush1.msra.mxu0 0.0
    %704 = vmatprep.subr.mxu0 0.0
    %705 = vmatpush1.msra.mxu0 0.0
    %706 = vmatprep.subr.mxu0 0.0
    %707 = vmatpush1.msra.mxu0 0.0
    %708 = vmatprep.subr.mxu0 0.0
    %709 = vmatpush1.msra.mxu0 0.0
    %710 = vmatprep.subr.mxu0 0.0
    %711 = vmatpush1.msra.mxu0 0.0
    %712 = vmatprep.subr.mxu0 0.0
    %713 = vmatpush1.msra.mxu0 0.0
    %714 = vmatprep.subr.mxu0 0.0
    %715 = vmatpush1.msra.mxu0 0.0
    %716 = vmatprep.subr.mxu0 0.0
    %717 = vmatpush1.msra.mxu0 0.0
    %718 = vmatprep.subr.mxu0 0.0
    %719 = vmatpush1.msra.mxu0 0.0
    %720 = vmatprep.subr.mxu0 0.0
    %721 = vmatpush1.msra.mxu0 0.0
    %722 = vmatprep.subr.mxu0 0.0
    %723 = vmatpush1.msra.mxu0 0.0
    %724 = vmatprep.subr.mxu0 0.0
    %725 = vmatpush1.msra.mxu0 0.0
    %726 = vmatprep.subr.mxu0 0.0
    %727 = vmatpush1.msra.mxu0 0.0
    %728 = vmatprep.subr.mxu0 0.0
    %729 = vmatpush1.msra.mxu0 0.0
    %730 = vmatprep.subr.mxu0 0.0
    %731 = vmatpush1.msra.mxu0 0.0
    %732 = vmatprep.subr.mxu0 0.0
    %733 = vmatpush1.msra.mxu0 0.0
    %734 = vmatprep.subr.mxu0 0.0
    %735 = vmatpush1.msra.mxu0 0.0
    %736 = vmatprep.subr.mxu0 0.0
    %737 = vmatpush1.msra.mxu0 0.0
    %738 = vmatprep.subr.mxu0 0.0
    %739 = vmatpush1.msra.mxu0 0.0
    %740 = vmatprep.subr.mxu0 0.0
    %741 = vmatpush1.msra.mxu0 0.0
    %742 = vmatprep.subr.mxu0 0.0
    %743 = vmatpush1.msra.mxu0 0.0
    %744 = vmatprep.subr.mxu0 0.0
    %745 = vmatpush1.msra.mxu0 0.0
    %746 = vmatprep.subr.mxu0 0.0
    %747 = vmatpush1.msra.mxu0 0.0
    %748 = vmatprep.subr.mxu0 0.0
    %749 = vmatpush1.msra.mxu0 0.0
    %750 = vmatprep.subr.mxu0 0.0
    %751 = vmatpush1.msra.mxu0 0.0
    %752 = vmatprep.subr.mxu0 0.0
    %753 = vmatpush1.msra.mxu0 0.0
    %754 = vmatprep.subr.mxu0 0.0
    %755 = vmatpush1.msra.mxu0 0.0
    %756 = vmatprep.subr.mxu0 0.0
    %757 = vmatpush1.msra.mxu0 0.0
    %758 = vmatprep.mubr.f32.mxu0 0.0
    %759 = vmatmul.mubr.f32.gmra.mrb[0].mxu0 %v688
    %v760 = vpop.f32.mrb[0].mxu0
    %v761 = vadd.f32 0.0, %v760
    %v762 = vpop.f32.mrb[0].mxu0
    %763 = vdwg.mxu0
    %v764 = vsel %vm687, %v443, 0
    %v767 = vsel %vm690, %v686, 0
    %769 = vmatprep.subr.mxu0 0.0
    %770 = vmatpush1.msra.mxu0 %v767
    %771 = vmatprep.subr.mxu0 0.0
    %772 = vmatpush1.msra.mxu0 0.0
    %773 = vmatprep.subr.mxu0 0.0
    %774 = vmatpush1.msra.mxu0 0.0
    %775 = vmatprep.subr.mxu0 0.0
    %776 = vmatpush1.msra.mxu0 0.0
    %777 = vmatprep.subr.mxu0 0.0
    %778 = vmatpush1.msra.mxu0 0.0
    %779 = vmatprep.subr.mxu0 0.0
    %780 = vmatpush1.msra.mxu0 0.0
    %781 = vmatprep.subr.mxu0 0.0
    %782 = vmatpush1.msra.mxu0 0.0
    %783 = vmatprep.subr.mxu0 0.0
    %784 = vmatpush1.msra.mxu0 0.0
    %785 = vmatprep.subr.mxu0 0.0
    %786 = vmatpush1.msra.mxu0 0.0
    %787 = vmatprep.subr.mxu0 0.0
    %788 = vmatpush1.msra.mxu0 0.0
    %789 = vmatprep.subr.mxu0 0.0
    %790 = vmatpush1.msra.mxu0 0.0
    %791 = vmatprep.subr.mxu0 0.0
    %792 = vmatpush1.msra.mxu0 0.0
    %793 = vmatprep.subr.mxu0 0.0
    %794 = vmatpush1.msra.mxu0 0.0
    %795 = vmatprep.subr.mxu0 0.0
    %796 = vmatpush1.msra.mxu0 0.0
    %797 = vmatprep.subr.mxu0 0.0
    %798 = vmatpush1.msra.mxu0 0.0
    %799 = vmatprep.subr.mxu0 0.0
    %800 = vmatpush1.msra.mxu0 0.0
    %801 = vmatprep.subr.mxu0 0.0
    %802 = vmatpush1.msra.mxu0 0.0
    %803 = vmatprep.subr.mxu0 0.0
    %804 = vmatpush1.msra.mxu0 0.0
    %805 = vmatprep.subr.mxu0 0.0
    %806 = vmatpush1.msra.mxu0 0.0
    %807 = vmatprep.subr.mxu0 0.0
    %808 = vmatpush1.msra.mxu0 0.0
    %809 = vmatprep.subr.mxu0 0.0
    %810 = vmatpush1.msra.mxu0 0.0
    %811 = vmatprep.subr.mxu0 0.0
    %812 = vmatpush1.msra.mxu0 0.0
    %813 = vmatprep.subr.mxu0 0.0
    %814 = vmatpush1.msra.mxu0 0.0
    %815 = vmatprep.subr.mxu0 0.0
    %816 = vmatpush1.msra.mxu0 0.0
    %817 = vmatprep.subr.mxu0 0.0
    %818 = vmatpush1.msra.mxu0 0.0
    %819 = vmatprep.subr.mxu0 0.0
    %820 = vmatpush1.msra.mxu0 0.0
    %821 = vmatprep.subr.mxu0 0.0
    %822 = vmatpush1.msra.mxu0 0.0
    %823 = vmatprep.subr.mxu0 0.0
    %824 = vmatpush1.msra.mxu0 0.0
    %825 = vmatprep.subr.mxu0 0.0
    %826 = vmatpush1.msra.mxu0 0.0
    %827 = vmatprep.subr.mxu0 0.0
    %828 = vmatpush1.msra.mxu0 0.0
    %829 = vmatprep.subr.mxu0 0.0
    %830 = vmatpush1.msra.mxu0 0.0
    %831 = vmatprep.subr.mxu0 0.0
    %832 = vmatpush1.msra.mxu0 0.0
    %833 = vmatprep.mubr.f32.mxu0 0.0
    %834 = vmatmul.mubr.f32.gmra.mrb[0].mxu0 %v764
    %v835 = vpop.f32.mrb[0].mxu0
    %v836 = vadd.f32 0.0, %v835
    %v837 = vpop.f32.mrb[0].mxu0
    %838 = vdwg.mxu0
    %v839 = vmul.f32 %v606, %v67
    %v840 = vmul.f32 %v682, %v69
    %v841 = vsub.f32 %v67, %v606
    %v842 = vsub.f32 %v69, %v682
    %845 = vrot.lane.b32.xlu0 %v841, 32
    %v846 = vpop.permute.xlu0 %845
    %847 = vrot.lane.b32.xlu0 %v842, 32
    %v848 = vpop.permute.xlu0 %847
    %v851 = vsel %vm71, %v839, %v846
    %v852 = vsel %vm71, %v840, %v848
    %v853 = vld [vmem:[%s4] sm:$0xff]
    %v854 = vld [vmem:[%s4 + $0x8] sm:$0xff]
    %v855 = vld [vmem:[%s4 + $0x10] sm:$0xff]
    %v856 = vld [vmem:[%s4 + $0x18] sm:$0xff]
    %v857 = vld [vmem:[%s4 + $0x20] sm:$0xff]
    %v858 = vld [vmem:[%s4 + $0x28] sm:$0xff]
    %v859 = vld [vmem:[%s4 + $0x30] sm:$0xff]
    %v860 = vld [vmem:[%s4 + $0x38] sm:$0xff]
    %861 = vrot.lane.b32.xlu0 %v327, 96
    %v862 = vpop.permute.xlu0 %861
    %vm864 = vcmask 523264
    %v866 = vsel %vm864, %v851, 0
    %v869 = vsel %vm864, %v852, 0
    %871 = vmatprep.subr.mxu0 0.0
    %872 = vmatpush1.msra.mxu0 %v853
    %873 = vmatprep.subr.mxu0 0.0
    %874 = vmatpush1.msra.mxu0 %v854
    %875 = vmatprep.subr.mxu0 0.0
    %876 = vmatpush1.msra.mxu0 %v855
    %877 = vmatprep.subr.mxu0 0.0
    %878 = vmatpush1.msra.mxu0 %v856
    %879 = vmatprep.subr.mxu0 0.0
    %880 = vmatpush1.msra.mxu0 %v857
    %881 = vmatprep.subr.mxu0 0.0
    %882 = vmatpush1.msra.mxu0 %v858
    %883 = vmatprep.subr.mxu0 0.0
    %884 = vmatpush1.msra.mxu0 %v859
    %885 = vmatprep.subr.mxu0 0.0
    %886 = vmatpush1.msra.mxu0 %v860
    %887 = vmatprep.subr.mxu0 0.0
    %888 = vmatpush1.msra.mxu0 0.0
    %889 = vmatprep.subr.mxu0 0.0
    %890 = vmatpush1.msra.mxu0 0.0
    %891 = vmatprep.subr.mxu0 0.0
    %892 = vmatpush1.msra.mxu0 0.0
    %893 = vmatprep.subr.mxu0 0.0
    %894 = vmatpush1.msra.mxu0 0.0
    %895 = vmatprep.subr.mxu0 0.0
    %896 = vmatpush1.msra.mxu0 0.0
    %897 = vmatprep.subr.mxu0 0.0
    %898 = vmatpush1.msra.mxu0 0.0
    %899 = vmatprep.subr.mxu0 0.0
    %900 = vmatpush1.msra.mxu0 0.0
    %901 = vmatprep.subr.mxu0 0.0
    %902 = vmatpush1.msra.mxu0 0.0
    %903 = vmatprep.subr.mxu0 0.0
    %904 = vmatpush1.msra.mxu0 0.0
    %905 = vmatprep.subr.mxu0 0.0
    %906 = vmatpush1.msra.mxu0 0.0
    %907 = vmatprep.subr.mxu0 0.0
    %908 = vmatpush1.msra.mxu0 0.0
    %909 = vmatprep.subr.mxu0 0.0
    %910 = vmatpush1.msra.mxu0 0.0
    %911 = vmatprep.subr.mxu0 0.0
    %912 = vmatpush1.msra.mxu0 0.0
    %913 = vmatprep.subr.mxu0 0.0
    %914 = vmatpush1.msra.mxu0 0.0
    %915 = vmatprep.subr.mxu0 0.0
    %916 = vmatpush1.msra.mxu0 0.0
    %917 = vmatprep.subr.mxu0 0.0
    %918 = vmatpush1.msra.mxu0 0.0
    %919 = vmatprep.subr.mxu0 0.0
    %920 = vmatpush1.msra.mxu0 0.0
    %921 = vmatprep.subr.mxu0 0.0
    %922 = vmatpush1.msra.mxu0 0.0
    %923 = vmatprep.subr.mxu0 0.0
    %924 = vmatpush1.msra.mxu0 0.0
    %925 = vmatprep.subr.mxu0 0.0
    %926 = vmatpush1.msra.mxu0 0.0
    %927 = vmatprep.subr.mxu0 0.0
    %928 = vmatpush1.msra.mxu0 0.0
    %929 = vmatprep.subr.mxu0 0.0
    %930 = vmatpush1.msra.mxu0 0.0
    %931 = vmatprep.subr.mxu0 0.0
    %932 = vmatpush1.msra.mxu0 0.0
    %933 = vmatprep.subr.mxu0 0.0
    %934 = vmatpush1.msra.mxu0 0.0
    %935 = vmatprep.mubr.f32.mxu0 0.0
    %936 = vmatmul.mubr.f32.gmra.mrb[0].mxu0 %v866
    %v937 = vpop.f32.mrb[0].mxu0
    %v938 = vadd.f32 %v862, %v937
    %v939 = vpop.f32.mrb[0].mxu0
    %940 = vmatprep.mubr.f32.mxu0 0.0
    %941 = vmatmul.mubr.f32.gmra.mrb[0].mxu0 %v869
    %v942 = vpop.f32.mrb[0].mxu0
    %v943 = vadd.f32 %v862, %v942
    %v944 = vpop.f32.mrb[0].mxu0
    %945 = vdwg.mxu0
    %v946 = vmax.f32 %v938, 0.0
    %v947 = vmax.f32 %v943, 0.0
    %948 = vrot.lane.b32.xlu0 %v67, 32
    %v949 = vpop.permute.xlu0 %948
    %950 = vrot.lane.b32.xlu0 %v69, 32
    %v951 = vpop.permute.xlu0 %950
    %v954 = vsel %vm71, %v946, %v949
    %v955 = vsel %vm71, %v947, %v951
    %v956 = vld [vmem:[%s5] sm:$0xff]
    %v957 = vld [vmem:[%s5 + $0x8] sm:$0xff]
    %v958 = vld [vmem:[%s5 + $0x10] sm:$0xff]
    %v959 = vld [vmem:[%s5 + $0x18] sm:$0xff]
    %v960 = vld [vmem:[%s5 + $0x20] sm:$0xff]
    %v961 = vld [vmem:[%s5 + $0x28] sm:$0xff]
    %v962 = vld [vmem:[%s5 + $0x30] sm:$0xff]
    %v963 = vld [vmem:[%s5 + $0x38] sm:$0xff]
    %964 = vrot.lane.b32.xlu0 %v327, 64
    %v965 = vpop.permute.xlu0 %964
    %v968 = vsel %vm864, %v954, 0
    %v971 = vsel %vm864, %v955, 0
    %973 = vmatprep.subr.mxu0 0.0
    %974 = vmatpush1.msra.mxu0 %v956
    %975 = vmatprep.subr.mxu0 0.0
    %976 = vmatpush1.msra.mxu0 %v957
    %977 = vmatprep.subr.mxu0 0.0
    %978 = vmatpush1.msra.mxu0 %v958
    %979 = vmatprep.subr.mxu0 0.0
    %980 = vmatpush1.msra.mxu0 %v959
    %981 = vmatprep.subr.mxu0 0.0
    %982 = vmatpush1.msra.mxu0 %v960
    %983 = vmatprep.subr.mxu0 0.0
    %984 = vmatpush1.msra.mxu0 %v961
    %985 = vmatprep.subr.mxu0 0.0
    %986 = vmatpush1.msra.mxu0 %v962
    %987 = vmatprep.subr.mxu0 0.0
    %988 = vmatpush1.msra.mxu0 %v963
    %989 = vmatprep.subr.mxu0 0.0
    %990 = vmatpush1.msra.mxu0 0.0
    %991 = vmatprep.subr.mxu0 0.0
    %992 = vmatpush1.msra.mxu0 0.0
    %993 = vmatprep.subr.mxu0 0.0
    %994 = vmatpush1.msra.mxu0 0.0
    %995 = vmatprep.subr.mxu0 0.0
    %996 = vmatpush1.msra.mxu0 0.0
    %997 = vmatprep.subr.mxu0 0.0
    %998 = vmatpush1.msra.mxu0 0.0
    %999 = vmatprep.subr.mxu0 0.0
    %1000 = vmatpush1.msra.mxu0 0.0
    %1001 = vmatprep.subr.mxu0 0.0
    %1002 = vmatpush1.msra.mxu0 0.0
    %1003 = vmatprep.subr.mxu0 0.0
    %1004 = vmatpush1.msra.mxu0 0.0
    %1005 = vmatprep.subr.mxu0 0.0
    %1006 = vmatpush1.msra.mxu0 0.0
    %1007 = vmatprep.subr.mxu0 0.0
    %1008 = vmatpush1.msra.mxu0 0.0
    %1009 = vmatprep.subr.mxu0 0.0
    %1010 = vmatpush1.msra.mxu0 0.0
    %1011 = vmatprep.subr.mxu0 0.0
    %1012 = vmatpush1.msra.mxu0 0.0
    %1013 = vmatprep.subr.mxu0 0.0
    %1014 = vmatpush1.msra.mxu0 0.0
    %1015 = vmatprep.subr.mxu0 0.0
    %1016 = vmatpush1.msra.mxu0 0.0
    %1017 = vmatprep.subr.mxu0 0.0
    %1018 = vmatpush1.msra.mxu0 0.0
    %1019 = vmatprep.subr.mxu0 0.0
    %1020 = vmatpush1.msra.mxu0 0.0
    %1021 = vmatprep.subr.mxu0 0.0
    %1022 = vmatpush1.msra.mxu0 0.0
    %1023 = vmatprep.subr.mxu0 0.0
    %1024 = vmatpush1.msra.mxu0 0.0
    %1025 = vmatprep.subr.mxu0 0.0
    %1026 = vmatpush1.msra.mxu0 0.0
    %1027 = vmatprep.subr.mxu0 0.0
    %1028 = vmatpush1.msra.mxu0 0.0
    %1029 = vmatprep.subr.mxu0 0.0
    %1030 = vmatpush1.msra.mxu0 0.0
    %1031 = vmatprep.subr.mxu0 0.0
    %1032 = vmatpush1.msra.mxu0 0.0
    %1033 = vmatprep.subr.mxu0 0.0
    %1034 = vmatpush1.msra.mxu0 0.0
    %1035 = vmatprep.subr.mxu0 0.0
    %1036 = vmatpush1.msra.mxu0 0.0
    %1037 = vmatprep.mubr.f32.mxu0 0.0
    %1038 = vmatmul.mubr.f32.gmra.mrb[0].mxu0 %v968
    %v1039 = vpop.f32.mrb[0].mxu0
    %v1040 = vadd.f32 %v965, %v1039
    %v1041 = vpop.f32.mrb[0].mxu0
    %1042 = vmatprep.mubr.f32.mxu0 0.0
    %1043 = vmatmul.mubr.f32.gmra.mrb[0].mxu0 %v971
    %v1044 = vpop.f32.mrb[0].mxu0
    %v1045 = vadd.f32 %v965, %v1044
    %v1046 = vpop.f32.mrb[0].mxu0
    %1047 = vdwg.mxu0
    %1050 = vrot.lane.b32.xlu0 %v761, 32
    %v1051 = vpop.permute.xlu0 %1050
    %1052 = vrot.lane.b32.xlu0 %v836, 32
    %v1053 = vpop.permute.xlu0 %1052
    %v1056 = vsel %vm71, %v1040, %v1051
    %v1057 = vsel %vm71, %v1045, %v1053
    %1058 = vst.msk [vmem:[#allocation2] sm:$0xff] %vm864, %v1056
    %1059 = vst.msk [vmem:[#allocation2 + $0x8] sm:$0xff] %vm864, %v1057
    // Predicated region
    $region30: #{tpu_custom_call.1} parent=1 // pred_check
      _
    $region31: #{tpu_custom_call.1} parent=1 // pred_check_branch
      %1061 = sbr.rel (0) target = $region33
    $region32: #{tpu_custom_call.1} parent=1 // pred_region
      %s1063 = ssub.s32 256, 256
      %1064 = vsyncadd [#allocation3], %s1063
      %s1065 = sshll.u32 [#allocation2], 4
      %s1066 = int_to_ptr.vmem [resolvable:$true] %s1065
      %1071 = dma.vmem_to_hbm [thread:$0]  %s1066, 256, %s7, [#allocation3], 128, 128, 8
    $region33: #{tpu_custom_call.1} parent=1 // pred_fallthru
      _
    // Predicated region
    $region34: #{tpu_custom_call.1} parent=1 // pred_check
      _
    $region35: #{tpu_custom_call.1} parent=1 // pred_check_branch
      %1073 = sbr.rel (0) target = $region37
    $region36: #{tpu_custom_call.1} parent=1 // pred_region
      %1074 = dma.done [#allocation3], 256
    $region37: #{tpu_custom_call.1} parent=1 // pred_fallthru
      _
    %1075 = vsyncpa [#allocation3], 1

</llo_original>
